<compile_context>
chip_gen: v7x
topology: tpu7x:2x2x1
jax: 0.10.0
libtpu: 0.0.40
codegen_flags: <defaults>
</compile_context>

<pallas_src>
import functools

import jax
import jax.numpy as jnp
from jax.experimental import pallas as pl
from jax.experimental.pallas import tpu as pltpu


# Non-center offsets of the 3x3 stencil, row-major (kh, kw) order.
_OFF8 = tuple((dh, dw) for dh in (-1, 0, 1) for dw in (-1, 0, 1)
              if not (dh == 0 and dw == 0))


def hybrid_attention_kernel(x_ref, masks_ref, cw_ref, wfft_ref, wdwc_ref,
                            dwb_ref, saw2f_ref, sab2f_ref, saw2d_ref,
                            sab2d_ref, sa_ref, o_ref, *, W, c_fft):
    Bt, C, HWp = x_ref.shape

    # ---------------- MEW ----------------
    # FFT branches fold to per-channel scales (real scalar weights); the +x
    # residual is folded into the scales (wfft = 1 + w, wdwc = 1 + center tap).
    x_fft = x_ref[:, :c_fft, :].astype(jnp.float32)        # (Bt, 3C/4, HWp)
    x_dw = x_ref[:, c_fft:, :].astype(jnp.float32)         # (Bt,  C/4, HWp)

    y_fft = x_fft * wfft_ref[...]                           # pure scale, no rolls
    y_dw = x_dw * wdwc_ref[...] + dwb_ref[...]              # center tap + bias
    for m, (dh, dw) in enumerate(_OFF8):                    # 8 taps, C/4 channels only
        shift = (-(dh * W + dw)) % HWp
        y_dw = y_dw + pltpu.roll(x_dw, shift, 2) * cw_ref[m]   # mask*tap pre-combined

    # ---------------- SA ----------------
    mx = jnp.maximum(jnp.max(y_fft, axis=1, keepdims=True),
                     jnp.max(y_dw, axis=1, keepdims=True))  # (Bt, 1, HWp)
    av = (jnp.sum(y_fft, axis=1, keepdims=True) +
          jnp.sum(y_dw, axis=1, keepdims=True)) * (1.0 / C)

    # 2->1 3x3 conv: linear in (mx, av), so combine channels per tap before the
    # roll (no concatenate, no cross-sublane sum).  Scalars live in SMEM.
    a1 = mx * sa_ref[4] + av * sa_ref[9 + 4] + sa_ref[18]   # center tap + bias
    for m, (dh, dw) in enumerate(_OFF8):
        k = (dh + 1) * 3 + (dw + 1)
        shift = (-(dh * W + dw)) % HWp
        q = mx * sa_ref[k] + av * sa_ref[9 + k]
        a1 = a1 + pltpu.roll(q, shift, 2) * masks_ref[m]
    s1 = a1 * jax.nn.sigmoid(a1)                            # SiLU, (Bt, 1, HWp)

    attn_f = jax.nn.sigmoid(saw2f_ref[...] * s1 + sab2f_ref[...])
    o_ref[:, :c_fft, :] = (y_fft * attn_f).astype(o_ref.dtype)
    attn_d = jax.nn.sigmoid(saw2d_ref[...] * s1 + sab2d_ref[...])
    o_ref[:, c_fft:, :] = (y_dw * attn_d).astype(o_ref.dtype)


def _chip_profile():
    """Best-effort (vmem_capacity_bytes, has_two_tensorcores)."""
    vmem_cap = None
    try:
        info = pltpu.get_tpu_info()
        vmem_cap = int(getattr(info, "vmem_capacity_bytes"))
    except Exception:
        vmem_cap = None
    kind = ""
    try:
        kind = jax.devices()[0].device_kind.lower()
    except Exception:
        pass
    single_tc = ("v5 lite" in kind) or ("v5e" in kind) or ("v6" in kind)
    if vmem_cap is None:
        vmem_cap = (128 << 20) if (("v5" in kind) or ("v6" in kind)) else (64 << 20)
    return vmem_cap, (not single_tc)


def _pick_block_batch(B, C, HWp, itemsize, block_batch=None):
    if block_batch is not None:
        bt = max(1, min(int(block_batch), B))
        while B % bt:                      # round to a divisor of B (no dropped rows)
            bt -= 1
        return bt
    vmem_cap, two_tc = _chip_profile()
    # Larger budget on 128 MiB parts (v5e/v6e); conservative on v7x (64 MiB).
    budget = (40 << 20) if vmem_cap >= (100 << 20) else (24 << 20)
    const_bytes = 4 * (8 * (C // 4) * HWp + 8 * HWp + 8 * C + 64)
    # dbl-buffered input + dbl-buffered output blocks + ~4 f32 temporaries:
    per_batch = C * HWp * (4 * itemsize + 16)
    bt = max(1, (budget - const_bytes) // max(per_batch, 1))
    if two_tc and B >= 2:
        bt = min(bt, B // 2)               # keep >=2 grid steps for both TCs
    bt = int(max(1, min(bt, B)))
    while B % bt:
        bt -= 1
    return bt


def hybrid_attention(x, params, *, block_batch=None):
    scale, dww, dwb, saw1, sab1, saw2, sab2 = params
    B, C, H, W = x.shape
    assert C % 4 == 0, "Channels must be divisible by 4"
    chunk = C // 4
    c_fft = 3 * chunk
    HW = H * W
    HWp = ((HW + 127) // 128) * 128        # lane axis: multiple of 128
    f32 = jnp.float32

    # Per-channel weight columns (residual folded into the multiplicative term).
    wfft = (1.0 + scale.astype(f32)).reshape(c_fft, 1)
    wdwc = (1.0 + dww.astype(f32)[:, 4]).reshape(chunk, 1)
    dwb_c = dwb.astype(f32).reshape(chunk, 1)
    saw2f = saw2.astype(f32)[:c_fft].reshape(c_fft, 1)
    sab2f = sab2.astype(f32)[:c_fft].reshape(c_fft, 1)
    saw2d = saw2.astype(f32)[c_fft:].reshape(chunk, 1)
    sab2d = sab2.astype(f32)[c_fft:].reshape(chunk, 1)
    sa_scalars = jnp.concatenate(
        [saw1.astype(f32)[0], saw1.astype(f32)[1], sab1.astype(f32).reshape(1)])

    # 0/1 boundary masks for the 8 non-center taps of the flattened 3x3 stencil.
    hh, ww = jnp.meshgrid(jnp.arange(H), jnp.arange(W), indexing="ij")
    hh = hh.reshape(HW)
    ww = ww.reshape(HW)
    rows = []
    for dh, dw in _OFF8:
        rows.append(((hh + dh >= 0) & (hh + dh < H) &
                     (ww + dw >= 0) & (ww + dw < W)).astype(f32))
    mask8 = jnp.stack(rows, axis=0)                       # (8, HW)
    if HWp != HW:
        mask8 = jnp.pad(mask8, ((0, 0), (0, HWp - HW)))   # zero mask on padding
    masks = mask8.reshape(8, 1, HWp)

    # Pre-combined (mask * tap) slabs for the depthwise off-center taps.
    off_k = jnp.array([(dh + 1) * 3 + (dw + 1) for dh, dw in _OFF8])
    dw_off = dww.astype(f32)[:, off_k]                    # (chunk, 8)
    cw = mask8[:, None, :] * dw_off.T[:, :, None]         # (8, chunk, HWp)

    # Lane-dense layout: flatten (and pad) the spatial dims onto the lane axis.
    x2d = x.reshape(B, C, HW)
    if HWp != HW:
        x2d = jnp.pad(x2d, ((0, 0), (0, 0), (0, HWp - HW)))

    Bt = _pick_block_batch(B, C, HWp, x.dtype.itemsize, block_batch)
    grid = (B // Bt,)

    vmem_cap, _ = _chip_profile()
    vmem_limit = int(max(32 << 20, min(vmem_cap - (16 << 20), 96 << 20)))

    kernel = functools.partial(hybrid_attention_kernel, W=W, c_fft=c_fft)

    out2d = pl.pallas_call(
        kernel,
        out_shape=jax.ShapeDtypeStruct((B, C, HWp), x.dtype),
        grid_spec=pltpu.PrefetchScalarGridSpec(
            num_scalar_prefetch=0,
            grid=grid,
            in_specs=[
                pl.BlockSpec((Bt, C, HWp), lambda b: (b, 0, 0)),
                pl.BlockSpec((8, 1, HWp), lambda b: (0, 0, 0)),
                pl.BlockSpec((8, chunk, HWp), lambda b: (0, 0, 0)),
                pl.BlockSpec((c_fft, 1), lambda b: (0, 0)),
                pl.BlockSpec((chunk, 1), lambda b: (0, 0)),
                pl.BlockSpec((chunk, 1), lambda b: (0, 0)),
                pl.BlockSpec((c_fft, 1), lambda b: (0, 0)),
                pl.BlockSpec((c_fft, 1), lambda b: (0, 0)),
                pl.BlockSpec((chunk, 1), lambda b: (0, 0)),
                pl.BlockSpec((chunk, 1), lambda b: (0, 0)),
                pl.BlockSpec(memory_space=pltpu.MemorySpace.SMEM),
            ],
            out_specs=pl.BlockSpec((Bt, C, HWp), lambda b: (b, 0, 0)),
        ),
        compiler_params=pltpu.CompilerParams(
            dimension_semantics=("parallel",),
            vmem_limit_bytes=vmem_limit,
        ),
    )(x2d, masks, cw, wfft, wdwc, dwb_c, saw2f, sab2f, saw2d, sab2d, sa_scalars)

    if HWp != HW:
        out2d = out2d[:, :, :HW]
    return out2d.reshape(B, C, H, W)


def reference(x, params):
    """Pure-JAX reference mirroring the PyTorch forward (incl. the FFT path)."""
    scale, dww, dwb, saw1, sab1, saw2, sab2 = params
    B, C, H, W = x.shape
    chunk = C // 4
    x1, x2, x3, x4 = jnp.split(x, 4, axis=1)
    w_hw = scale[0 * chunk:1 * chunk].reshape(1, chunk, 1, 1)
    w_cw = scale[1 * chunk:2 * chunk].reshape(1, chunk, 1, 1)
    w_ch = scale[2 * chunk:3 * chunk].reshape(1, chunk, 1, 1)
    dw_w = dww.reshape(chunk, 1, 3, 3)
    y4 = jax.lax.conv_general_dilated(
        x4, dw_w, (1, 1), "SAME",
        dimension_numbers=("NCHW", "OIHW", "NCHW"),
        feature_group_count=chunk) + dwb.reshape(1, chunk, 1, 1)
    y = jnp.concatenate(
        [jnp.real(jnp.fft.ifft2(jnp.fft.fft2(x1) * w_hw)),
         jnp.real(jnp.fft.ifft2(jnp.fft.fft2(x2) * w_cw)),
         jnp.real(jnp.fft.ifft2(jnp.fft.fft2(x3) * w_ch)),
         y4], axis=1) + x
    mx = jnp.max(y, axis=1, keepdims=True)
    av = jnp.mean(y, axis=1, keepdims=True)
    pooled = jnp.concatenate([mx, av], axis=1)
    a1 = jax.lax.conv_general_dilated(
        pooled, saw1.reshape(1, 2, 3, 3), (1, 1), "SAME",
        dimension_numbers=("NCHW", "OIHW", "NCHW")) + sab1.reshape(1, 1, 1, 1)
    s1 = a1 * jax.nn.sigmoid(a1)
    attn = jax.nn.sigmoid(saw2.reshape(1, C, 1, 1) * s1 + sab2.reshape(1, C, 1, 1))
    return y * attn


def make_params(key, C):
    chunk = C // 4
    ks = jax.random.split(key, 7)
    scale = jax.random.normal(ks[0], (3 * chunk,), jnp.float32) * 0.5  # weight_HW/CW/CH
    dww = jax.random.normal(ks[1], (chunk, 9), jnp.float32) * 0.3      # dw_conv weight
    dwb = jax.random.normal(ks[2], (chunk,), jnp.float32) * 0.1        # dw_conv bias
    saw1 = jax.random.normal(ks[3], (2, 9), jnp.float32) * 0.3         # SA conv 2->1, 3x3
    sab1 = jax.random.normal(ks[4], (1,), jnp.float32) * 0.1
    saw2 = jax.random.normal(ks[5], (C,), jnp.float32) * 0.3           # SA conv 1->C, 1x1
    sab2 = jax.random.normal(ks[6], (C,), jnp.float32) * 0.1
    return (scale, dww, dwb, saw1, sab1, saw2, sab2)


if __name__ == "__main__":
    B, C, H, W = 2, 8, 16, 16
    key = jax.random.PRNGKey(0)
    kx, kp = jax.random.split(key)
    x = jax.random.normal(kx, (B, C, H, W), jnp.float32)
    params = make_params(kp, C)

    out = hybrid_attention(x, params)
    out = jax.block_until_ready(out)

    ref = reference(x, params)
    err = float(jnp.max(jnp.abs(out - ref)))
    assert jnp.allclose(out, ref, rtol=1e-3, atol=1e-3), f"max abs err {err}"
    print("KERNEL_OK")
</pallas_src>

<mosaic_0001>
module attributes {stable_mosaic.version = 11 : i64} {
  func.func @hybrid_attention_kernel(%arg0: i32, %arg1: memref<1x8x256xf32, #tpu.memory_space<vmem>>, %arg2: memref<8x1x256xf32, #tpu.memory_space<vmem>>, %arg3: memref<8x2x256xf32, #tpu.memory_space<vmem>>, %arg4: memref<6x1xf32, #tpu.memory_space<vmem>>, %arg5: memref<2x1xf32, #tpu.memory_space<vmem>>, %arg6: memref<2x1xf32, #tpu.memory_space<vmem>>, %arg7: memref<6x1xf32, #tpu.memory_space<vmem>>, %arg8: memref<6x1xf32, #tpu.memory_space<vmem>>, %arg9: memref<2x1xf32, #tpu.memory_space<vmem>>, %arg10: memref<2x1xf32, #tpu.memory_space<vmem>>, %arg11: memref<19xf32, #tpu.memory_space<smem>>, %arg12: memref<1x8x256xf32, #tpu.memory_space<vmem>>) attributes {dimension_semantics = [#tpu.dimension_semantics<parallel>], iteration_bounds = array<i64: 2>, scalar_prefetch = 0 : i64, scratch_operands = 0 : i64, tpu.core_type = #tpu.core_type<tc>, window_params = [{transform_indices = @transform_0, window_bounds = array<i64: 1, 8, 256>}, {pipeline_mode = #tpu.pipeline_mode<synchronous>, transform_indices = @transform_1, window_bounds = array<i64: 8, 1, 256>}, {pipeline_mode = #tpu.pipeline_mode<synchronous>, transform_indices = @transform_2, window_bounds = array<i64: 8, 2, 256>}, {pipeline_mode = #tpu.pipeline_mode<synchronous>, transform_indices = @transform_3, window_bounds = array<i64: 6, 1>}, {pipeline_mode = #tpu.pipeline_mode<synchronous>, transform_indices = @transform_4, window_bounds = array<i64: 2, 1>}, {pipeline_mode = #tpu.pipeline_mode<synchronous>, transform_indices = @transform_5, window_bounds = array<i64: 2, 1>}, {pipeline_mode = #tpu.pipeline_mode<synchronous>, transform_indices = @transform_6, window_bounds = array<i64: 6, 1>}, {pipeline_mode = #tpu.pipeline_mode<synchronous>, transform_indices = @transform_7, window_bounds = array<i64: 6, 1>}, {pipeline_mode = #tpu.pipeline_mode<synchronous>, transform_indices = @transform_8, window_bounds = array<i64: 2, 1>}, {pipeline_mode = #tpu.pipeline_mode<synchronous>, transform_indices = @transform_9, window_bounds = array<i64: 2, 1>}, {transform_indices = @transform_10, window_bounds = array<i64: 19>}, {transform_indices = @transform_11, window_bounds = array<i64: 1, 8, 256>}]} {
    %c0 = arith.constant 0 : index
    %c0_0 = arith.constant 0 : index
    %c0_1 = arith.constant 0 : index
    %0 = vector.load %arg1[%c0, %c0_0, %c0_1] : memref<1x8x256xf32, #tpu.memory_space<vmem>>, vector<1x6x256xf32>
    %c0_2 = arith.constant 0 : index
    %c6 = arith.constant 6 : index
    %c0_3 = arith.constant 0 : index
    %1 = vector.load %arg1[%c0_2, %c6, %c0_3] : memref<1x8x256xf32, #tpu.memory_space<vmem>>, vector<1x2x256xf32>
    %c0_4 = arith.constant 0 : index
    %c0_5 = arith.constant 0 : index
    %2 = vector.load %arg4[%c0_4, %c0_5] : memref<6x1xf32, #tpu.memory_space<vmem>>, vector<6x1xf32>
    %3 = vector.shape_cast %2 : vector<6x1xf32> to vector<1x6x1xf32>
    %4 = vector.broadcast %3 : vector<1x6x1xf32> to vector<1x6x256xf32>
    %5 = arith.mulf %0, %4 : vector<1x6x256xf32>
    %c0_6 = arith.constant 0 : index
    %c0_7 = arith.constant 0 : index
    %6 = vector.load %arg5[%c0_6, %c0_7] : memref<2x1xf32, #tpu.memory_space<vmem>>, vector<2x1xf32>
    %7 = vector.shape_cast %6 : vector<2x1xf32> to vector<1x2x1xf32>
    %8 = vector.broadcast %7 : vector<1x2x1xf32> to vector<1x2x256xf32>
    %9 = arith.mulf %1, %8 : vector<1x2x256xf32>
    %c0_8 = arith.constant 0 : index
    %c0_9 = arith.constant 0 : index
    %10 = vector.load %arg6[%c0_8, %c0_9] : memref<2x1xf32, #tpu.memory_space<vmem>>, vector<2x1xf32>
    %11 = vector.shape_cast %10 : vector<2x1xf32> to vector<1x2x1xf32>
    %12 = vector.broadcast %11 : vector<1x2x1xf32> to vector<1x2x256xf32>
    %13 = arith.addf %9, %12 : vector<1x2x256xf32>
    %c17_i32 = arith.constant 17 : i32
    %14 = tpu.dynamic_rotate %1 by %c17_i32 dim 2 : vector<1x2x256xf32>, i32 -> vector<1x2x256xf32>
    %c0_10 = arith.constant 0 : index
    %c0_11 = arith.constant 0 : index
    %c0_12 = arith.constant 0 : index
    %15 = vector.load %arg3[%c0_10, %c0_11, %c0_12] : memref<8x2x256xf32, #tpu.memory_space<vmem>>, vector<1x2x256xf32>
    %16 = vector.shape_cast %15 : vector<1x2x256xf32> to vector<2x256xf32>
    %17 = vector.shape_cast %16 : vector<2x256xf32> to vector<1x2x256xf32>
    %18 = arith.mulf %14, %17 : vector<1x2x256xf32>
    %19 = arith.addf %13, %18 : vector<1x2x256xf32>
    %c16_i32 = arith.constant 16 : i32
    %20 = tpu.dynamic_rotate %1 by %c16_i32 dim 2 : vector<1x2x256xf32>, i32 -> vector<1x2x256xf32>
    %c1 = arith.constant 1 : index
    %c0_13 = arith.constant 0 : index
    %c0_14 = arith.constant 0 : index
    %21 = vector.load %arg3[%c1, %c0_13, %c0_14] : memref<8x2x256xf32, #tpu.memory_space<vmem>>, vector<1x2x256xf32>
    %22 = vector.shape_cast %21 : vector<1x2x256xf32> to vector<2x256xf32>
    %23 = vector.shape_cast %22 : vector<2x256xf32> to vector<1x2x256xf32>
    %24 = arith.mulf %20, %23 : vector<1x2x256xf32>
    %25 = arith.addf %19, %24 : vector<1x2x256xf32>
    %c15_i32 = arith.constant 15 : i32
    %26 = tpu.dynamic_rotate %1 by %c15_i32 dim 2 : vector<1x2x256xf32>, i32 -> vector<1x2x256xf32>
    %c2 = arith.constant 2 : index
    %c0_15 = arith.constant 0 : index
    %c0_16 = arith.constant 0 : index
    %27 = vector.load %arg3[%c2, %c0_15, %c0_16] : memref<8x2x256xf32, #tpu.memory_space<vmem>>, vector<1x2x256xf32>
    %28 = vector.shape_cast %27 : vector<1x2x256xf32> to vector<2x256xf32>
    %29 = vector.shape_cast %28 : vector<2x256xf32> to vector<1x2x256xf32>
    %30 = arith.mulf %26, %29 : vector<1x2x256xf32>
    %31 = arith.addf %25, %30 : vector<1x2x256xf32>
    %c1_i32 = arith.constant 1 : i32
    %32 = tpu.dynamic_rotate %1 by %c1_i32 dim 2 : vector<1x2x256xf32>, i32 -> vector<1x2x256xf32>
    %c3 = arith.constant 3 : index
    %c0_17 = arith.constant 0 : index
    %c0_18 = arith.constant 0 : index
    %33 = vector.load %arg3[%c3, %c0_17, %c0_18] : memref<8x2x256xf32, #tpu.memory_space<vmem>>, vector<1x2x256xf32>
    %34 = vector.shape_cast %33 : vector<1x2x256xf32> to vector<2x256xf32>
    %35 = vector.shape_cast %34 : vector<2x256xf32> to vector<1x2x256xf32>
    %36 = arith.mulf %32, %35 : vector<1x2x256xf32>
    %37 = arith.addf %31, %36 : vector<1x2x256xf32>
    %c255_i32 = arith.constant 255 : i32
    %38 = tpu.dynamic_rotate %1 by %c255_i32 dim 2 : vector<1x2x256xf32>, i32 -> vector<1x2x256xf32>
    %c4 = arith.constant 4 : index
    %c0_19 = arith.constant 0 : index
    %c0_20 = arith.constant 0 : index
    %39 = vector.load %arg3[%c4, %c0_19, %c0_20] : memref<8x2x256xf32, #tpu.memory_space<vmem>>, vector<1x2x256xf32>
    %40 = vector.shape_cast %39 : vector<1x2x256xf32> to vector<2x256xf32>
    %41 = vector.shape_cast %40 : vector<2x256xf32> to vector<1x2x256xf32>
    %42 = arith.mulf %38, %41 : vector<1x2x256xf32>
    %43 = arith.addf %37, %42 : vector<1x2x256xf32>
    %c241_i32 = arith.constant 241 : i32
    %44 = tpu.dynamic_rotate %1 by %c241_i32 dim 2 : vector<1x2x256xf32>, i32 -> vector<1x2x256xf32>
    %c5 = arith.constant 5 : index
    %c0_21 = arith.constant 0 : index
    %c0_22 = arith.constant 0 : index
    %45 = vector.load %arg3[%c5, %c0_21, %c0_22] : memref<8x2x256xf32, #tpu.memory_space<vmem>>, vector<1x2x256xf32>
    %46 = vector.shape_cast %45 : vector<1x2x256xf32> to vector<2x256xf32>
    %47 = vector.shape_cast %46 : vector<2x256xf32> to vector<1x2x256xf32>
    %48 = arith.mulf %44, %47 : vector<1x2x256xf32>
    %49 = arith.addf %43, %48 : vector<1x2x256xf32>
    %c240_i32 = arith.constant 240 : i32
    %50 = tpu.dynamic_rotate %1 by %c240_i32 dim 2 : vector<1x2x256xf32>, i32 -> vector<1x2x256xf32>
    %c6_23 = arith.constant 6 : index
    %c0_24 = arith.constant 0 : index
    %c0_25 = arith.constant 0 : index
    %51 = vector.load %arg3[%c6_23, %c0_24, %c0_25] : memref<8x2x256xf32, #tpu.memory_space<vmem>>, vector<1x2x256xf32>
    %52 = vector.shape_cast %51 : vector<1x2x256xf32> to vector<2x256xf32>
    %53 = vector.shape_cast %52 : vector<2x256xf32> to vector<1x2x256xf32>
    %54 = arith.mulf %50, %53 : vector<1x2x256xf32>
    %55 = arith.addf %49, %54 : vector<1x2x256xf32>
    %c239_i32 = arith.constant 239 : i32
    %56 = tpu.dynamic_rotate %1 by %c239_i32 dim 2 : vector<1x2x256xf32>, i32 -> vector<1x2x256xf32>
    %c7 = arith.constant 7 : index
    %c0_26 = arith.constant 0 : index
    %c0_27 = arith.constant 0 : index
    %57 = vector.load %arg3[%c7, %c0_26, %c0_27] : memref<8x2x256xf32, #tpu.memory_space<vmem>>, vector<1x2x256xf32>
    %58 = vector.shape_cast %57 : vector<1x2x256xf32> to vector<2x256xf32>
    %59 = vector.shape_cast %58 : vector<2x256xf32> to vector<1x2x256xf32>
    %60 = arith.mulf %56, %59 : vector<1x2x256xf32>
    %61 = arith.addf %55, %60 : vector<1x2x256xf32>
    %cst = arith.constant dense<0xFF800000> : vector<1x256xf32>
    %62 = vector.multi_reduction <maximumf>, %5, %cst [1] : vector<1x6x256xf32> to vector<1x256xf32>
    %63 = vector.shape_cast %62 : vector<1x256xf32> to vector<1x1x256xf32>
    %cst_28 = arith.constant dense<0xFF800000> : vector<1x256xf32>
    %64 = vector.multi_reduction <maximumf>, %61, %cst_28 [1] : vector<1x2x256xf32> to vector<1x256xf32>
    %65 = vector.shape_cast %64 : vector<1x256xf32> to vector<1x1x256xf32>
    %66 = arith.maximumf %63, %65 : vector<1x1x256xf32>
    %cst_29 = arith.constant dense<0.000000e+00> : vector<1x256xf32>
    %67 = vector.multi_reduction <add>, %5, %cst_29 [1] : vector<1x6x256xf32> to vector<1x256xf32>
    %68 = vector.shape_cast %67 : vector<1x256xf32> to vector<1x1x256xf32>
    %cst_30 = arith.constant dense<0.000000e+00> : vector<1x256xf32>
    %69 = vector.multi_reduction <add>, %61, %cst_30 [1] : vector<1x2x256xf32> to vector<1x256xf32>
    %70 = vector.shape_cast %69 : vector<1x256xf32> to vector<1x1x256xf32>
    %71 = arith.addf %68, %70 : vector<1x1x256xf32>
    %cst_31 = arith.constant 1.250000e-01 : f32
    %72 = vector.broadcast %cst_31 : f32 to vector<1x1x256xf32>
    %73 = arith.mulf %71, %72 : vector<1x1x256xf32>
    %c4_32 = arith.constant 4 : index
    %74 = memref.load %arg11[%c4_32] : memref<19xf32, #tpu.memory_space<smem>>
    %75 = vector.broadcast %74 : f32 to vector<1x1x256xf32>
    %76 = arith.mulf %66, %75 : vector<1x1x256xf32>
    %c13 = arith.constant 13 : index
    %77 = memref.load %arg11[%c13] : memref<19xf32, #tpu.memory_space<smem>>
    %78 = vector.broadcast %77 : f32 to vector<1x1x256xf32>
    %79 = arith.mulf %73, %78 : vector<1x1x256xf32>
    %80 = arith.addf %76, %79 : vector<1x1x256xf32>
    %c18 = arith.constant 18 : index
    %81 = memref.load %arg11[%c18] : memref<19xf32, #tpu.memory_space<smem>>
    %82 = vector.broadcast %81 : f32 to vector<1x1x256xf32>
    %83 = arith.addf %80, %82 : vector<1x1x256xf32>
    %c0_33 = arith.constant 0 : index
    %84 = memref.load %arg11[%c0_33] : memref<19xf32, #tpu.memory_space<smem>>
    %85 = vector.broadcast %84 : f32 to vector<1x1x256xf32>
    %86 = arith.mulf %66, %85 : vector<1x1x256xf32>
    %c9 = arith.constant 9 : index
    %87 = memref.load %arg11[%c9] : memref<19xf32, #tpu.memory_space<smem>>
    %88 = vector.broadcast %87 : f32 to vector<1x1x256xf32>
    %89 = arith.mulf %73, %88 : vector<1x1x256xf32>
    %90 = arith.addf %86, %89 : vector<1x1x256xf32>
    %c17_i32_34 = arith.constant 17 : i32
    %91 = tpu.dynamic_rotate %90 by %c17_i32_34 dim 2 : vector<1x1x256xf32>, i32 -> vector<1x1x256xf32>
    %c0_35 = arith.constant 0 : index
    %c0_36 = arith.constant 0 : index
    %c0_37 = arith.constant 0 : index
    %92 = vector.load %arg2[%c0_35, %c0_36, %c0_37] : memref<8x1x256xf32, #tpu.memory_space<vmem>>, vector<1x1x256xf32>
    %93 = vector.shape_cast %92 : vector<1x1x256xf32> to vector<1x256xf32>
    %94 = vector.shape_cast %93 : vector<1x256xf32> to vector<1x1x256xf32>
    %95 = arith.mulf %91, %94 : vector<1x1x256xf32>
    %96 = arith.addf %83, %95 : vector<1x1x256xf32>
    %c1_38 = arith.constant 1 : index
    %97 = memref.load %arg11[%c1_38] : memref<19xf32, #tpu.memory_space<smem>>
    %98 = vector.broadcast %97 : f32 to vector<1x1x256xf32>
    %99 = arith.mulf %66, %98 : vector<1x1x256xf32>
    %c10 = arith.constant 10 : index
    %100 = memref.load %arg11[%c10] : memref<19xf32, #tpu.memory_space<smem>>
    %101 = vector.broadcast %100 : f32 to vector<1x1x256xf32>
    %102 = arith.mulf %73, %101 : vector<1x1x256xf32>
    %103 = arith.addf %99, %102 : vector<1x1x256xf32>
    %c16_i32_39 = arith.constant 16 : i32
    %104 = tpu.dynamic_rotate %103 by %c16_i32_39 dim 2 : vector<1x1x256xf32>, i32 -> vector<1x1x256xf32>
    %c1_40 = arith.constant 1 : index
    %c0_41 = arith.constant 0 : index
    %c0_42 = arith.constant 0 : index
    %105 = vector.load %arg2[%c1_40, %c0_41, %c0_42] : memref<8x1x256xf32, #tpu.memory_space<vmem>>, vector<1x1x256xf32>
    %106 = vector.shape_cast %105 : vector<1x1x256xf32> to vector<1x256xf32>
    %107 = vector.shape_cast %106 : vector<1x256xf32> to vector<1x1x256xf32>
    %108 = arith.mulf %104, %107 : vector<1x1x256xf32>
    %109 = arith.addf %96, %108 : vector<1x1x256xf32>
    %c2_43 = arith.constant 2 : index
    %110 = memref.load %arg11[%c2_43] : memref<19xf32, #tpu.memory_space<smem>>
    %111 = vector.broadcast %110 : f32 to vector<1x1x256xf32>
    %112 = arith.mulf %66, %111 : vector<1x1x256xf32>
    %c11 = arith.constant 11 : index
    %113 = memref.load %arg11[%c11] : memref<19xf32, #tpu.memory_space<smem>>
    %114 = vector.broadcast %113 : f32 to vector<1x1x256xf32>
    %115 = arith.mulf %73, %114 : vector<1x1x256xf32>
    %116 = arith.addf %112, %115 : vector<1x1x256xf32>
    %c15_i32_44 = arith.constant 15 : i32
    %117 = tpu.dynamic_rotate %116 by %c15_i32_44 dim 2 : vector<1x1x256xf32>, i32 -> vector<1x1x256xf32>
    %c2_45 = arith.constant 2 : index
    %c0_46 = arith.constant 0 : index
    %c0_47 = arith.constant 0 : index
    %118 = vector.load %arg2[%c2_45, %c0_46, %c0_47] : memref<8x1x256xf32, #tpu.memory_space<vmem>>, vector<1x1x256xf32>
    %119 = vector.shape_cast %118 : vector<1x1x256xf32> to vector<1x256xf32>
    %120 = vector.shape_cast %119 : vector<1x256xf32> to vector<1x1x256xf32>
    %121 = arith.mulf %117, %120 : vector<1x1x256xf32>
    %122 = arith.addf %109, %121 : vector<1x1x256xf32>
    %c3_48 = arith.constant 3 : index
    %123 = memref.load %arg11[%c3_48] : memref<19xf32, #tpu.memory_space<smem>>
    %124 = vector.broadcast %123 : f32 to vector<1x1x256xf32>
    %125 = arith.mulf %66, %124 : vector<1x1x256xf32>
    %c12 = arith.constant 12 : index
    %126 = memref.load %arg11[%c12] : memref<19xf32, #tpu.memory_space<smem>>
    %127 = vector.broadcast %126 : f32 to vector<1x1x256xf32>
    %128 = arith.mulf %73, %127 : vector<1x1x256xf32>
    %129 = arith.addf %125, %128 : vector<1x1x256xf32>
    %c1_i32_49 = arith.constant 1 : i32
    %130 = tpu.dynamic_rotate %129 by %c1_i32_49 dim 2 : vector<1x1x256xf32>, i32 -> vector<1x1x256xf32>
    %c3_50 = arith.constant 3 : index
    %c0_51 = arith.constant 0 : index
    %c0_52 = arith.constant 0 : index
    %131 = vector.load %arg2[%c3_50, %c0_51, %c0_52] : memref<8x1x256xf32, #tpu.memory_space<vmem>>, vector<1x1x256xf32>
    %132 = vector.shape_cast %131 : vector<1x1x256xf32> to vector<1x256xf32>
    %133 = vector.shape_cast %132 : vector<1x256xf32> to vector<1x1x256xf32>
    %134 = arith.mulf %130, %133 : vector<1x1x256xf32>
    %135 = arith.addf %122, %134 : vector<1x1x256xf32>
    %c5_53 = arith.constant 5 : index
    %136 = memref.load %arg11[%c5_53] : memref<19xf32, #tpu.memory_space<smem>>
    %137 = vector.broadcast %136 : f32 to vector<1x1x256xf32>
    %138 = arith.mulf %66, %137 : vector<1x1x256xf32>
    %c14 = arith.constant 14 : index
    %139 = memref.load %arg11[%c14] : memref<19xf32, #tpu.memory_space<smem>>
    %140 = vector.broadcast %139 : f32 to vector<1x1x256xf32>
    %141 = arith.mulf %73, %140 : vector<1x1x256xf32>
    %142 = arith.addf %138, %141 : vector<1x1x256xf32>
    %c255_i32_54 = arith.constant 255 : i32
    %143 = tpu.dynamic_rotate %142 by %c255_i32_54 dim 2 : vector<1x1x256xf32>, i32 -> vector<1x1x256xf32>
    %c4_55 = arith.constant 4 : index
    %c0_56 = arith.constant 0 : index
    %c0_57 = arith.constant 0 : index
    %144 = vector.load %arg2[%c4_55, %c0_56, %c0_57] : memref<8x1x256xf32, #tpu.memory_space<vmem>>, vector<1x1x256xf32>
    %145 = vector.shape_cast %144 : vector<1x1x256xf32> to vector<1x256xf32>
    %146 = vector.shape_cast %145 : vector<1x256xf32> to vector<1x1x256xf32>
    %147 = arith.mulf %143, %146 : vector<1x1x256xf32>
    %148 = arith.addf %135, %147 : vector<1x1x256xf32>
    %c6_58 = arith.constant 6 : index
    %149 = memref.load %arg11[%c6_58] : memref<19xf32, #tpu.memory_space<smem>>
    %150 = vector.broadcast %149 : f32 to vector<1x1x256xf32>
    %151 = arith.mulf %66, %150 : vector<1x1x256xf32>
    %c15 = arith.constant 15 : index
    %152 = memref.load %arg11[%c15] : memref<19xf32, #tpu.memory_space<smem>>
    %153 = vector.broadcast %152 : f32 to vector<1x1x256xf32>
    %154 = arith.mulf %73, %153 : vector<1x1x256xf32>
    %155 = arith.addf %151, %154 : vector<1x1x256xf32>
    %c241_i32_59 = arith.constant 241 : i32
    %156 = tpu.dynamic_rotate %155 by %c241_i32_59 dim 2 : vector<1x1x256xf32>, i32 -> vector<1x1x256xf32>
    %c5_60 = arith.constant 5 : index
    %c0_61 = arith.constant 0 : index
    %c0_62 = arith.constant 0 : index
    %157 = vector.load %arg2[%c5_60, %c0_61, %c0_62] : memref<8x1x256xf32, #tpu.memory_space<vmem>>, vector<1x1x256xf32>
    %158 = vector.shape_cast %157 : vector<1x1x256xf32> to vector<1x256xf32>
    %159 = vector.shape_cast %158 : vector<1x256xf32> to vector<1x1x256xf32>
    %160 = arith.mulf %156, %159 : vector<1x1x256xf32>
    %161 = arith.addf %148, %160 : vector<1x1x256xf32>
    %c7_63 = arith.constant 7 : index
    %162 = memref.load %arg11[%c7_63] : memref<19xf32, #tpu.memory_space<smem>>
    %163 = vector.broadcast %162 : f32 to vector<1x1x256xf32>
    %164 = arith.mulf %66, %163 : vector<1x1x256xf32>
    %c16 = arith.constant 16 : index
    %165 = memref.load %arg11[%c16] : memref<19xf32, #tpu.memory_space<smem>>
    %166 = vector.broadcast %165 : f32 to vector<1x1x256xf32>
    %167 = arith.mulf %73, %166 : vector<1x1x256xf32>
    %168 = arith.addf %164, %167 : vector<1x1x256xf32>
    %c240_i32_64 = arith.constant 240 : i32
    %169 = tpu.dynamic_rotate %168 by %c240_i32_64 dim 2 : vector<1x1x256xf32>, i32 -> vector<1x1x256xf32>
    %c6_65 = arith.constant 6 : index
    %c0_66 = arith.constant 0 : index
    %c0_67 = arith.constant 0 : index
    %170 = vector.load %arg2[%c6_65, %c0_66, %c0_67] : memref<8x1x256xf32, #tpu.memory_space<vmem>>, vector<1x1x256xf32>
    %171 = vector.shape_cast %170 : vector<1x1x256xf32> to vector<1x256xf32>
    %172 = vector.shape_cast %171 : vector<1x256xf32> to vector<1x1x256xf32>
    %173 = arith.mulf %169, %172 : vector<1x1x256xf32>
    %174 = arith.addf %161, %173 : vector<1x1x256xf32>
    %c8 = arith.constant 8 : index
    %175 = memref.load %arg11[%c8] : memref<19xf32, #tpu.memory_space<smem>>
    %176 = vector.broadcast %175 : f32 to vector<1x1x256xf32>
    %177 = arith.mulf %66, %176 : vector<1x1x256xf32>
    %c17 = arith.constant 17 : index
    %178 = memref.load %arg11[%c17] : memref<19xf32, #tpu.memory_space<smem>>
    %179 = vector.broadcast %178 : f32 to vector<1x1x256xf32>
    %180 = arith.mulf %73, %179 : vector<1x1x256xf32>
    %181 = arith.addf %177, %180 : vector<1x1x256xf32>
    %c239_i32_68 = arith.constant 239 : i32
    %182 = tpu.dynamic_rotate %181 by %c239_i32_68 dim 2 : vector<1x1x256xf32>, i32 -> vector<1x1x256xf32>
    %c7_69 = arith.constant 7 : index
    %c0_70 = arith.constant 0 : index
    %c0_71 = arith.constant 0 : index
    %183 = vector.load %arg2[%c7_69, %c0_70, %c0_71] : memref<8x1x256xf32, #tpu.memory_space<vmem>>, vector<1x1x256xf32>
    %184 = vector.shape_cast %183 : vector<1x1x256xf32> to vector<1x256xf32>
    %185 = vector.shape_cast %184 : vector<1x256xf32> to vector<1x1x256xf32>
    %186 = arith.mulf %182, %185 : vector<1x1x256xf32>
    %187 = arith.addf %174, %186 : vector<1x1x256xf32>
    %188 = arith.negf %187 : vector<1x1x256xf32>
    %189 = math.exp %188 : vector<1x1x256xf32>
    %cst_72 = arith.constant 1.000000e+00 : f32
    %190 = vector.broadcast %cst_72 : f32 to vector<1x1x256xf32>
    %191 = arith.addf %190, %189 : vector<1x1x256xf32>
    %192 = arith.divf %190, %191 : vector<1x1x256xf32>
    %193 = arith.mulf %187, %192 : vector<1x1x256xf32>
    %c0_73 = arith.constant 0 : index
    %c0_74 = arith.constant 0 : index
    %194 = vector.load %arg7[%c0_73, %c0_74] : memref<6x1xf32, #tpu.memory_space<vmem>>, vector<6x1xf32>
    %195 = vector.shape_cast %194 : vector<6x1xf32> to vector<1x6x1xf32>
    %196 = vector.broadcast %195 : vector<1x6x1xf32> to vector<1x6x256xf32>
    %197 = vector.broadcast %193 : vector<1x1x256xf32> to vector<1x6x256xf32>
    %198 = arith.mulf %196, %197 : vector<1x6x256xf32>
    %c0_75 = arith.constant 0 : index
    %c0_76 = arith.constant 0 : index
    %199 = vector.load %arg8[%c0_75, %c0_76] : memref<6x1xf32, #tpu.memory_space<vmem>>, vector<6x1xf32>
    %200 = vector.shape_cast %199 : vector<6x1xf32> to vector<1x6x1xf32>
    %201 = vector.broadcast %200 : vector<1x6x1xf32> to vector<1x6x256xf32>
    %202 = arith.addf %198, %201 : vector<1x6x256xf32>
    %203 = arith.negf %202 : vector<1x6x256xf32>
    %204 = math.exp %203 : vector<1x6x256xf32>
    %cst_77 = arith.constant 1.000000e+00 : f32
    %205 = vector.broadcast %cst_77 : f32 to vector<1x6x256xf32>
    %206 = arith.addf %205, %204 : vector<1x6x256xf32>
    %207 = arith.divf %205, %206 : vector<1x6x256xf32>
    %208 = arith.mulf %5, %207 : vector<1x6x256xf32>
    %c0_78 = arith.constant 0 : index
    %c0_79 = arith.constant 0 : index
    %c0_80 = arith.constant 0 : index
    %209 = vector.load %arg12[%c0_78, %c0_79, %c0_80] : memref<1x8x256xf32, #tpu.memory_space<vmem>>, vector<1x6x256xf32>
    tpu.vector_store %arg12[%c0_78, %c0_79, %c0_80], %208 {strides = array<i32>} : memref<1x8x256xf32, #tpu.memory_space<vmem>>, vector<1x6x256xf32>,
    %c0_81 = arith.constant 0 : index
    %c0_82 = arith.constant 0 : index
    %210 = vector.load %arg9[%c0_81, %c0_82] : memref<2x1xf32, #tpu.memory_space<vmem>>, vector<2x1xf32>
    %211 = vector.shape_cast %210 : vector<2x1xf32> to vector<1x2x1xf32>
    %212 = vector.broadcast %211 : vector<1x2x1xf32> to vector<1x2x256xf32>
    %213 = vector.broadcast %193 : vector<1x1x256xf32> to vector<1x2x256xf32>
    %214 = arith.mulf %212, %213 : vector<1x2x256xf32>
    %c0_83 = arith.constant 0 : index
    %c0_84 = arith.constant 0 : index
    %215 = vector.load %arg10[%c0_83, %c0_84] : memref<2x1xf32, #tpu.memory_space<vmem>>, vector<2x1xf32>
    %216 = vector.shape_cast %215 : vector<2x1xf32> to vector<1x2x1xf32>
    %217 = vector.broadcast %216 : vector<1x2x1xf32> to vector<1x2x256xf32>
    %218 = arith.addf %214, %217 : vector<1x2x256xf32>
    %219 = arith.negf %218 : vector<1x2x256xf32>
    %220 = math.exp %219 : vector<1x2x256xf32>
    %cst_85 = arith.constant 1.000000e+00 : f32
    %221 = vector.broadcast %cst_85 : f32 to vector<1x2x256xf32>
    %222 = arith.addf %221, %220 : vector<1x2x256xf32>
    %223 = arith.divf %221, %222 : vector<1x2x256xf32>
    %224 = arith.mulf %61, %223 : vector<1x2x256xf32>
    %c0_86 = arith.constant 0 : index
    %c6_87 = arith.constant 6 : index
    %c0_88 = arith.constant 0 : index
    %225 = vector.load %arg12[%c0_86, %c6_87, %c0_88] : memref<1x8x256xf32, #tpu.memory_space<vmem>>, vector<1x2x256xf32>
    tpu.vector_store %arg12[%c0_86, %c6_87, %c0_88], %224 {strides = array<i32>} : memref<1x8x256xf32, #tpu.memory_space<vmem>>, vector<1x2x256xf32>,
    return
  }
  func.func @transform_0(%arg0: i32) -> (i32, i32, i32) {
    %c0_i32 = arith.constant 0 : i32
    %c0_i32_0 = arith.constant 0 : i32
    %c0_i32_1 = arith.constant 0 : i32
    return %arg0, %c0_i32, %c0_i32_0 : i32, i32, i32
  }
  func.func @transform_1(%arg0: i32) -> (i32, i32, i32) {
    %c0_i32 = arith.constant 0 : i32
    %c0_i32_0 = arith.constant 0 : i32
    %c0_i32_1 = arith.constant 0 : i32
    %c0_i32_2 = arith.constant 0 : i32
    return %c0_i32, %c0_i32_0, %c0_i32_1 : i32, i32, i32
  }
  func.func @transform_2(%arg0: i32) -> (i32, i32, i32) {
    %c0_i32 = arith.constant 0 : i32
    %c0_i32_0 = arith.constant 0 : i32
    %c0_i32_1 = arith.constant 0 : i32
    %c0_i32_2 = arith.constant 0 : i32
    return %c0_i32, %c0_i32_0, %c0_i32_1 : i32, i32, i32
  }
  func.func @transform_3(%arg0: i32) -> (i32, i32) {
    %c0_i32 = arith.constant 0 : i32
    %c0_i32_0 = arith.constant 0 : i32
    %c0_i32_1 = arith.constant 0 : i32
    return %c0_i32, %c0_i32_0 : i32, i32
  }
  func.func @transform_4(%arg0: i32) -> (i32, i32) {
    %c0_i32 = arith.constant 0 : i32
    %c0_i32_0 = arith.constant 0 : i32
    %c0_i32_1 = arith.constant 0 : i32
    return %c0_i32, %c0_i32_0 : i32, i32
  }
  func.func @transform_5(%arg0: i32) -> (i32, i32) {
    %c0_i32 = arith.constant 0 : i32
    %c0_i32_0 = arith.constant 0 : i32
    %c0_i32_1 = arith.constant 0 : i32
    return %c0_i32, %c0_i32_0 : i32, i32
  }
  func.func @transform_6(%arg0: i32) -> (i32, i32) {
    %c0_i32 = arith.constant 0 : i32
    %c0_i32_0 = arith.constant 0 : i32
    %c0_i32_1 = arith.constant 0 : i32
    return %c0_i32, %c0_i32_0 : i32, i32
  }
  func.func @transform_7(%arg0: i32) -> (i32, i32) {
    %c0_i32 = arith.constant 0 : i32
    %c0_i32_0 = arith.constant 0 : i32
    %c0_i32_1 = arith.constant 0 : i32
    return %c0_i32, %c0_i32_0 : i32, i32
  }
  func.func @transform_8(%arg0: i32) -> (i32, i32) {
    %c0_i32 = arith.constant 0 : i32
    %c0_i32_0 = arith.constant 0 : i32
    %c0_i32_1 = arith.constant 0 : i32
    return %c0_i32, %c0_i32_0 : i32, i32
  }
  func.func @transform_9(%arg0: i32) -> (i32, i32) {
    %c0_i32 = arith.constant 0 : i32
    %c0_i32_0 = arith.constant 0 : i32
    %c0_i32_1 = arith.constant 0 : i32
    return %c0_i32, %c0_i32_0 : i32, i32
  }
  func.func @transform_10(%arg0: i32) -> i32 {
    %c0_i32 = arith.constant 0 : i32
    %c0_i32_0 = arith.constant 0 : i32
    return %c0_i32 : i32
  }
  func.func @transform_11(%arg0: i32) -> (i32, i32, i32) {
    %c0_i32 = arith.constant 0 : i32
    %c0_i32_0 = arith.constant 0 : i32
    %c0_i32_1 = arith.constant 0 : i32
    return %arg0, %c0_i32, %c0_i32_0 : i32, i32, i32
  }
}

</mosaic_0001>

<llo_original>
// kernel: tpu_custom_call.1
$region0: #{tpu_custom_call.1}
  #allocation0 [shape = 'u32[]', space=smem, size = 0x4, offset = 0x4, fixed_abs, tag = 'smem constant byte address 0x4 - core index']
  #allocation1 [shape = 'u32[144,128]{1,0:T(1,128)}', space=vmem, size = 0x12000, scoped, tag = 'internal scratch']
  %s0 = inlined_call_operand.vmem [shape: f32[2,8,256], index: 0, kind: input, shape index: {}]
  %s1 = inlined_call_operand.hbm [shape: f32[8,1,256], index: 1, kind: input, shape index: {}]
  %s2 = inlined_call_operand.hbm [shape: f32[8,2,256], index: 2, kind: input, shape index: {}]
  %s3 = inlined_call_operand.vmem [shape: f32[6,1], index: 3, kind: input, shape index: {}]
  %s4 = inlined_call_operand.vmem [shape: f32[2,1], index: 4, kind: input, shape index: {}]
  %s5 = inlined_call_operand.vmem [shape: f32[2,1], index: 5, kind: input, shape index: {}]
  %s6 = inlined_call_operand.vmem [shape: f32[6,1], index: 6, kind: input, shape index: {}]
  %s7 = inlined_call_operand.vmem [shape: f32[6,1], index: 7, kind: input, shape index: {}]
  %s8 = inlined_call_operand.vmem [shape: f32[2,1], index: 8, kind: input, shape index: {}]
  %s9 = inlined_call_operand.vmem [shape: f32[2,1], index: 9, kind: input, shape index: {}]
  %s10 = inlined_call_operand.vmem [shape: f32[19], index: 10, kind: input, shape index: {}]
  %s11 = inlined_call_operand.hbm [shape: f32[2,8,256], index: 11, kind: output, shape index: {}]
  %s12 = sld [smem:[#allocation0]]
  $region89: #{tpu_custom_call.1} parent=0
    _
  %s14 = ssub.s32 1, %s12
  %s15 = scalar_select 0, %s14, %s12
  $region1: #{tpu_custom_call.1} parent=0
    #allocation2 [shape = 'u8[8192]{0}', space=vmem, size = 0x2000, scoped, tag = 'input window, operand 1, single buffered']
    #allocation3 [shape = 's32[2]{0}', space=sflag, size = 0x8, scoped, tag = 'scoped memory for tpu_custom_call.1']
    #allocation4 [shape = 's32[2]{0}', space=sflag, size = 0x8, scoped, tag = 'scoped memory for tpu_custom_call.1']
    #allocation5 [shape = 's32[2]{0}', space=sflag, size = 0x8, scoped, tag = 'scoped memory for tpu_custom_call.1']
    #allocation6 [shape = 'u8[16384]{0}', space=vmem, size = 0x4000, scoped, tag = 'input window, operand 2, single buffered']
    #allocation7 [shape = 's32[1]{0}', space=sflag, size = 0x4, scoped, tag = 'scoped memory for tpu_custom_call.1']
    #allocation8 [shape = 'u8[512]{0}', space=smem, size = 0x200, scoped, tag = 'input window, operand 10, single buffered']
    #allocation9 [shape = 'u8[16384]{0}', space=vmem, size = 0x4000, scoped, tag = 'output window, operand 0']
    %16 = vsyncpa [#allocation3], 0
    %17 = vsyncpa [#allocation7], 0
    %18 = vsyncpa [#allocation5], 0
    %19 = vsyncpa [#allocation4], 0
    %s20 = scalar_lea.sflag [#allocation4], 1
    %21 = vsyncpa %s20, 0
    loop: start=0, step=1, limit=4
    $region2: #{tpu_custom_call.1} parent=1 // loop_pre_header
      _
    $region3: #{tpu_custom_call.1} parent=1 // loop_header
      %s23 = sphi 0, %s27
      %p24 = scmp.ge.s32.totalorder %s23, 4
      %s33 = sphi 0, %s35
      %s36 = sphi 0, %s33
      %s37 = sphi 0, %s36
      %s53 = sphi 0, %s37
      %s57 = sphi 0, %s57
      %s59 = sphi 0, %s57
      %s60 = sphi 0, %s59
      %s74 = sphi 0, %s60
      %s78 = sphi 0, %s78
      %s80 = sphi 0, %s78
      %s81 = sphi 0, %s80
      %s95 = sphi 0, %s81
      %s99 = sphi 0, %s99
      %s101 = sphi 0, %s99
      %s102 = sphi 0, %s101
      %s116 = sphi 0, %s102
      %s120 = sphi 0, %s120
      %s122 = sphi 0, %s120
      %s123 = sphi 0, %s122
      %s137 = sphi 0, %s123
      %s141 = sphi 0, %s141
      %s143 = sphi 0, %s141
      %s144 = sphi 0, %s143
      %s158 = sphi 0, %s144
      %s162 = sphi 0, %s162
      %s164 = sphi 0, %s162
      %s165 = sphi 0, %s164
      %s179 = sphi 0, %s165
      %s183 = sphi 0, %s183
      %s185 = sphi 0, %s183
      %s186 = sphi 0, %s185
      %s200 = sphi 0, %s186
      %s204 = sphi 0, %s204
      %s206 = sphi 0, %s204
      %s207 = sphi 0, %s206
      %s221 = sphi 0, %s207
      %s225 = sphi 0, %s225
      %s227 = sphi 0, %s225
      %s228 = sphi 0, %s227
      %s242 = sphi 0, %s228
      %s246 = sphi 0, %s246
      %s248 = sphi 0, %s246
      %s249 = sphi 0, %s248
      %s263 = sphi 0, %s249
      %s269 = sphi 0, %s271
      %s272 = sphi 0, %s269
      %s273 = sphi 0, %s272
      %s289 = sphi 0, %s273
    $region4: #{tpu_custom_call.1} parent=1 // loop_header_branch
      %26 = sbr.rel (%p24) target = $region8
    $region5: #{tpu_custom_call.1} parent=1 // loop_body
      %s28 = ssub.s32 %s23, 1
      %s29 = ssub.s32 %s23, 2
      %s30 = sadd.s32 %s23, 1
      %s31 = ssub.s32 %s23, %s30
      %p32 = scmp.eq.s32.totalorder %s31, 0
      %s34 = sadd.s32 %s33, 1
      %s35 = scalar_select %p32, %s33, %s34
      %p38 = pneg %p32
      %p39 = scmp.eq.s32.totalorder %s23, 1
      %p40 = por %p38, %p39
      %p41 = scmp.ne.s32.totalorder %s33, %s36
      %p42 = scmp.eq.s32.totalorder %s23, 0
      %p43 = por %p41, %p42
      %p44 = scmp.ne.s32.totalorder %s33, %s36
      %p45 = scmp.eq.s32.totalorder %s28, 1
      %p46 = por %p44, %p45
      %p47 = scmp.ne.s32.totalorder %s36, %s37
      %p48 = scmp.eq.s32.totalorder %s28, 0
      %p49 = por %p47, %p48
      %p50 = scmp.ne.s32.totalorder %s36, %s37
      %p51 = scmp.eq.s32.totalorder %s29, 1
      %p52 = por %p50, %p51
      %p54 = scmp.ne.s32.totalorder %s37, %s53
      %p55 = scmp.eq.s32.totalorder %s29, 0
      %p56 = por %p54, %p55
      %s58 = sadd.s32 %s57, 1
      %p61 = scmp.eq.s32.totalorder %s23, 1
      %p62 = scmp.ne.s32.totalorder %s57, %s59
      %p63 = scmp.eq.s32.totalorder %s23, 0
      %p64 = por %p62, %p63
      %p65 = scmp.ne.s32.totalorder %s57, %s59
      %p66 = scmp.eq.s32.totalorder %s28, 1
      %p67 = por %p65, %p66
      %p68 = scmp.ne.s32.totalorder %s59, %s60
      %p69 = scmp.eq.s32.totalorder %s28, 0
      %p70 = por %p68, %p69
      %p71 = scmp.ne.s32.totalorder %s59, %s60
      %p72 = scmp.eq.s32.totalorder %s29, 1
      %p73 = por %p71, %p72
      %p75 = scmp.ne.s32.totalorder %s60, %s74
      %p76 = scmp.eq.s32.totalorder %s29, 0
      %p77 = por %p75, %p76
      %s79 = sadd.s32 %s78, 1
      %p82 = scmp.eq.s32.totalorder %s23, 1
      %p83 = scmp.ne.s32.totalorder %s78, %s80
      %p84 = scmp.eq.s32.totalorder %s23, 0
      %p85 = por %p83, %p84
      %p86 = scmp.ne.s32.totalorder %s78, %s80
      %p87 = scmp.eq.s32.totalorder %s28, 1
      %p88 = por %p86, %p87
      %p89 = scmp.ne.s32.totalorder %s80, %s81
      %p90 = scmp.eq.s32.totalorder %s28, 0
      %p91 = por %p89, %p90
      %p92 = scmp.ne.s32.totalorder %s80, %s81
      %p93 = scmp.eq.s32.totalorder %s29, 1
      %p94 = por %p92, %p93
      %p96 = scmp.ne.s32.totalorder %s81, %s95
      %p97 = scmp.eq.s32.totalorder %s29, 0
      %p98 = por %p96, %p97
      %s100 = sadd.s32 %s99, 1
      %p103 = scmp.eq.s32.totalorder %s23, 1
      %p104 = scmp.ne.s32.totalorder %s99, %s101
      %p105 = scmp.eq.s32.totalorder %s23, 0
      %p106 = por %p104, %p105
      %p107 = scmp.ne.s32.totalorder %s99, %s101
      %p108 = scmp.eq.s32.totalorder %s28, 1
      %p109 = por %p107, %p108
      %p110 = scmp.ne.s32.totalorder %s101, %s102
      %p111 = scmp.eq.s32.totalorder %s28, 0
      %p112 = por %p110, %p111
      %p113 = scmp.ne.s32.totalorder %s101, %s102
      %p114 = scmp.eq.s32.totalorder %s29, 1
      %p115 = por %p113, %p114
      %p117 = scmp.ne.s32.totalorder %s102, %s116
      %p118 = scmp.eq.s32.totalorder %s29, 0
      %p119 = por %p117, %p118
      %s121 = sadd.s32 %s120, 1
      %p124 = scmp.eq.s32.totalorder %s23, 1
      %p125 = scmp.ne.s32.totalorder %s120, %s122
      %p126 = scmp.eq.s32.totalorder %s23, 0
      %p127 = por %p125, %p126
      %p128 = scmp.ne.s32.totalorder %s120, %s122
      %p129 = scmp.eq.s32.totalorder %s28, 1
      %p130 = por %p128, %p129
      %p131 = scmp.ne.s32.totalorder %s122, %s123
      %p132 = scmp.eq.s32.totalorder %s28, 0
      %p133 = por %p131, %p132
      %p134 = scmp.ne.s32.totalorder %s122, %s123
      %p135 = scmp.eq.s32.totalorder %s29, 1
      %p136 = por %p134, %p135
      %p138 = scmp.ne.s32.totalorder %s123, %s137
      %p139 = scmp.eq.s32.totalorder %s29, 0
      %p140 = por %p138, %p139
      %s142 = sadd.s32 %s141, 1
      %p145 = scmp.eq.s32.totalorder %s23, 1
      %p146 = scmp.ne.s32.totalorder %s141, %s143
      %p147 = scmp.eq.s32.totalorder %s23, 0
      %p148 = por %p146, %p147
      %p149 = scmp.ne.s32.totalorder %s141, %s143
      %p150 = scmp.eq.s32.totalorder %s28, 1
      %p151 = por %p149, %p150
      %p152 = scmp.ne.s32.totalorder %s143, %s144
      %p153 = scmp.eq.s32.totalorder %s28, 0
      %p154 = por %p152, %p153
      %p155 = scmp.ne.s32.totalorder %s143, %s144
      %p156 = scmp.eq.s32.totalorder %s29, 1
      %p157 = por %p155, %p156
      %p159 = scmp.ne.s32.totalorder %s144, %s158
      %p160 = scmp.eq.s32.totalorder %s29, 0
      %p161 = por %p159, %p160
      %s163 = sadd.s32 %s162, 1
      %p166 = scmp.eq.s32.totalorder %s23, 1
      %p167 = scmp.ne.s32.totalorder %s162, %s164
      %p168 = scmp.eq.s32.totalorder %s23, 0
      %p169 = por %p167, %p168
      %p170 = scmp.ne.s32.totalorder %s162, %s164
      %p171 = scmp.eq.s32.totalorder %s28, 1
      %p172 = por %p170, %p171
      %p173 = scmp.ne.s32.totalorder %s164, %s165
      %p174 = scmp.eq.s32.totalorder %s28, 0
      %p175 = por %p173, %p174
      %p176 = scmp.ne.s32.totalorder %s164, %s165
      %p177 = scmp.eq.s32.totalorder %s29, 1
      %p178 = por %p176, %p177
      %p180 = scmp.ne.s32.totalorder %s165, %s179
      %p181 = scmp.eq.s32.totalorder %s29, 0
      %p182 = por %p180, %p181
      %s184 = sadd.s32 %s183, 1
      %p187 = scmp.eq.s32.totalorder %s23, 1
      %p188 = scmp.ne.s32.totalorder %s183, %s185
      %p189 = scmp.eq.s32.totalorder %s23, 0
      %p190 = por %p188, %p189
      %p191 = scmp.ne.s32.totalorder %s183, %s185
      %p192 = scmp.eq.s32.totalorder %s28, 1
      %p193 = por %p191, %p192
      %p194 = scmp.ne.s32.totalorder %s185, %s186
      %p195 = scmp.eq.s32.totalorder %s28, 0
      %p196 = por %p194, %p195
      %p197 = scmp.ne.s32.totalorder %s185, %s186
      %p198 = scmp.eq.s32.totalorder %s29, 1
      %p199 = por %p197, %p198
      %p201 = scmp.ne.s32.totalorder %s186, %s200
      %p202 = scmp.eq.s32.totalorder %s29, 0
      %p203 = por %p201, %p202
      %s205 = sadd.s32 %s204, 1
      %p208 = scmp.eq.s32.totalorder %s23, 1
      %p209 = scmp.ne.s32.totalorder %s204, %s206
      %p210 = scmp.eq.s32.totalorder %s23, 0
      %p211 = por %p209, %p210
      %p212 = scmp.ne.s32.totalorder %s204, %s206
      %p213 = scmp.eq.s32.totalorder %s28, 1
      %p214 = por %p212, %p213
      %p215 = scmp.ne.s32.totalorder %s206, %s207
      %p216 = scmp.eq.s32.totalorder %s28, 0
      %p217 = por %p215, %p216
      %p218 = scmp.ne.s32.totalorder %s206, %s207
      %p219 = scmp.eq.s32.totalorder %s29, 1
      %p220 = por %p218, %p219
      %p222 = scmp.ne.s32.totalorder %s207, %s221
      %p223 = scmp.eq.s32.totalorder %s29, 0
      %p224 = por %p222, %p223
      %s226 = sadd.s32 %s225, 1
      %p229 = scmp.eq.s32.totalorder %s23, 1
      %p230 = scmp.ne.s32.totalorder %s225, %s227
      %p231 = scmp.eq.s32.totalorder %s23, 0
      %p232 = por %p230, %p231
      %p233 = scmp.ne.s32.totalorder %s225, %s227
      %p234 = scmp.eq.s32.totalorder %s28, 1
      %p235 = por %p233, %p234
      %p236 = scmp.ne.s32.totalorder %s227, %s228
      %p237 = scmp.eq.s32.totalorder %s28, 0
      %p238 = por %p236, %p237
      %p239 = scmp.ne.s32.totalorder %s227, %s228
      %p240 = scmp.eq.s32.totalorder %s29, 1
      %p241 = por %p239, %p240
      %p243 = scmp.ne.s32.totalorder %s228, %s242
      %p244 = scmp.eq.s32.totalorder %s29, 0
      %p245 = por %p243, %p244
      %s247 = sadd.s32 %s246, 1
      %p250 = scmp.eq.s32.totalorder %s23, 1
      %p251 = scmp.ne.s32.totalorder %s246, %s248
      %p252 = scmp.eq.s32.totalorder %s23, 0
      %p253 = por %p251, %p252
      %p254 = scmp.ne.s32.totalorder %s246, %s248
      %p255 = scmp.eq.s32.totalorder %s28, 1
      %p256 = por %p254, %p255
      %p257 = scmp.ne.s32.totalorder %s248, %s249
      %p258 = scmp.eq.s32.totalorder %s28, 0
      %p259 = por %p257, %p258
      %p260 = scmp.ne.s32.totalorder %s248, %s249
      %p261 = scmp.eq.s32.totalorder %s29, 1
      %p262 = por %p260, %p261
      %p264 = scmp.ne.s32.totalorder %s249, %s263
      %p265 = scmp.eq.s32.totalorder %s29, 0
      %p266 = por %p264, %p265
      %s267 = ssub.s32 %s23, %s30
      %p268 = scmp.eq.s32.totalorder %s267, 0
      %s270 = sadd.s32 %s269, 1
      %s271 = scalar_select %p268, %s269, %s270
      %p274 = pneg %p268
      %p275 = scmp.eq.s32.totalorder %s23, 1
      %p276 = por %p274, %p275
      %p277 = scmp.ne.s32.totalorder %s269, %s272
      %p278 = scmp.eq.s32.totalorder %s23, 0
      %p279 = por %p277, %p278
      %p280 = scmp.ne.s32.totalorder %s269, %s272
      %p281 = scmp.eq.s32.totalorder %s28, 1
      %p282 = por %p280, %p281
      %p283 = scmp.ne.s32.totalorder %s272, %s273
      %p284 = scmp.eq.s32.totalorder %s28, 0
      %p285 = por %p283, %p284
      %p286 = scmp.ne.s32.totalorder %s272, %s273
      %p287 = scmp.eq.s32.totalorder %s29, 1
      %p288 = por %p286, %p287
      %p290 = scmp.ne.s32.totalorder %s273, %s289
      %p291 = scmp.eq.s32.totalorder %s29, 0
      %p292 = por %p290, %p291
      %p293 = scmp.le.s32.totalorder 1, %s23
      %p294 = scmp.lt.s32.totalorder %s23, 3
      %p295 = pnand %p293, %p294
      %p296 = pneg %p295
      // Predicated region
      $region9: #{tpu_custom_call.1} parent=5 // pred_check
        _
      $region10: #{tpu_custom_call.1} parent=5 // pred_check_branch
        %298 = sbr.rel (%p295) target = $region12
      $region11: #{tpu_custom_call.1} parent=5 // pred_region
        %s299 = ssub.s32 %s23, 1
        // Predicated region
        $region13: #{tpu_custom_call.1} parent=11 // pred_check
          %p300 = pneg %p70
        $region14: #{tpu_custom_call.1} parent=11 // pred_check_branch
          %302 = sbr.rel (%p300) target = $region16
        $region15: #{tpu_custom_call.1} parent=11 // pred_region
          %s304 = ssub.s32 256, 256
          %305 = vsyncadd [#allocation3], %s304
          %s306 = sshll.u32 [#allocation2], 4
          %s307 = int_to_ptr.vmem [resolvable:$true] %s306
          %312 = dma.hbm_to_vmem [thread:$0]  %s1, 256, %s307, [#allocation3], 32, 32, 2
        $region16: #{tpu_custom_call.1} parent=11 // pred_fallthru
          _
        // Predicated region
        $region17: #{tpu_custom_call.1} parent=11 // pred_check
          %p313 = pneg %p91
        $region18: #{tpu_custom_call.1} parent=11 // pred_check_branch
          %315 = sbr.rel (%p313) target = $region20
        $region19: #{tpu_custom_call.1} parent=11 // pred_region
          %s317 = ssub.s32 512, 512
          %318 = vsyncadd [#allocation7], %s317
          %s319 = sshll.u32 [#allocation6], 4
          %s320 = int_to_ptr.vmem [resolvable:$true] %s319
          %325 = dma.hbm_to_vmem [thread:$0]  %s2, 512, %s320, [#allocation7], 64, 64, 4
        $region20: #{tpu_custom_call.1} parent=11 // pred_fallthru
          _
        // Predicated region
        $region21: #{tpu_custom_call.1} parent=11 // pred_check
          %p326 = pneg %p112
        $region22: #{tpu_custom_call.1} parent=11 // pred_check_branch
          %328 = sbr.rel (%p326) target = $region24
        $region23: #{tpu_custom_call.1} parent=11 // pred_region
          _
        $region24: #{tpu_custom_call.1} parent=11 // pred_fallthru
          _
        // Predicated region
        $region25: #{tpu_custom_call.1} parent=11 // pred_check
          %p329 = pneg %p133
        $region26: #{tpu_custom_call.1} parent=11 // pred_check_branch
          %331 = sbr.rel (%p329) target = $region28
        $region27: #{tpu_custom_call.1} parent=11 // pred_region
          _
        $region28: #{tpu_custom_call.1} parent=11 // pred_fallthru
          _
        // Predicated region
        $region29: #{tpu_custom_call.1} parent=11 // pred_check
          %p332 = pneg %p154
        $region30: #{tpu_custom_call.1} parent=11 // pred_check_branch
          %334 = sbr.rel (%p332) target = $region32
        $region31: #{tpu_custom_call.1} parent=11 // pred_region
          _
        $region32: #{tpu_custom_call.1} parent=11 // pred_fallthru
          _
        // Predicated region
        $region33: #{tpu_custom_call.1} parent=11 // pred_check
          %p335 = pneg %p175
        $region34: #{tpu_custom_call.1} parent=11 // pred_check_branch
          %337 = sbr.rel (%p335) target = $region36
        $region35: #{tpu_custom_call.1} parent=11 // pred_region
          _
        $region36: #{tpu_custom_call.1} parent=11 // pred_fallthru
          _
        // Predicated region
        $region37: #{tpu_custom_call.1} parent=11 // pred_check
          %p338 = pneg %p196
        $region38: #{tpu_custom_call.1} parent=11 // pred_check_branch
          %340 = sbr.rel (%p338) target = $region40
        $region39: #{tpu_custom_call.1} parent=11 // pred_region
          _
        $region40: #{tpu_custom_call.1} parent=11 // pred_fallthru
          _
        // Predicated region
        $region41: #{tpu_custom_call.1} parent=11 // pred_check
          %p341 = pneg %p217
        $region42: #{tpu_custom_call.1} parent=11 // pred_check_branch
          %343 = sbr.rel (%p341) target = $region44
        $region43: #{tpu_custom_call.1} parent=11 // pred_region
          _
        $region44: #{tpu_custom_call.1} parent=11 // pred_fallthru
          _
        // Predicated region
        $region45: #{tpu_custom_call.1} parent=11 // pred_check
          %p344 = pneg %p238
        $region46: #{tpu_custom_call.1} parent=11 // pred_check_branch
          %346 = sbr.rel (%p344) target = $region48
        $region47: #{tpu_custom_call.1} parent=11 // pred_region
          _
        $region48: #{tpu_custom_call.1} parent=11 // pred_fallthru
          _
        // Predicated region
        $region49: #{tpu_custom_call.1} parent=11 // pred_check
          %p347 = pneg %p259
        $region50: #{tpu_custom_call.1} parent=11 // pred_check_branch
          %349 = sbr.rel (%p347) target = $region52
        $region51: #{tpu_custom_call.1} parent=11 // pred_region
          %s351 = ssub.s32 16, 16
          %352 = vsyncadd [#allocation5], %s351
          %s354 = sshll.u32 %s10, 4
          %s355 = int_to_ptr.vmem [resolvable:$true] %s354
          %357 = dma.vmem_to_smem %s355, 16, [#allocation8], [#allocation5]
        $region52: #{tpu_custom_call.1} parent=11 // pred_fallthru
          _
      $region12: #{tpu_custom_call.1} parent=5 // pred_fallthru
        _
      %p358 = scmp.lt.s32.totalorder %s23, 2
      // Predicated region
      $region53: #{tpu_custom_call.1} parent=5 // pred_check
        %p359 = pneg %p358
      $region54: #{tpu_custom_call.1} parent=5 // pred_check_branch
        %361 = sbr.rel (%p359) target = $region56
      $region55: #{tpu_custom_call.1} parent=5 // pred_region
        // Predicated region
        $region57: #{tpu_custom_call.1} parent=55 // pred_check
          %p362 = pneg %p43
        $region58: #{tpu_custom_call.1} parent=55 // pred_check_branch
          %364 = sbr.rel (%p362) target = $region60
        $region59: #{tpu_custom_call.1} parent=55 // pred_region
          %p365 = scmp.lt.s32.totalorder %s23, 1
          %s366 = scalar_select %p365, %s23, 1
          %s367 = smul.addr %s366, 2
          %s368 = smul.addr %s367, 8
          %s369 = scalar_lea.vmem %s0, %s368
        $region60: #{tpu_custom_call.1} parent=55 // pred_fallthru
          _
      $region56: #{tpu_custom_call.1} parent=5 // pred_fallthru
        _
      %p370 = scmp.le.s32.totalorder 1, %s23
      %p371 = scmp.lt.s32.totalorder %s23, 3
      %p372 = pnand %p370, %p371
      %p373 = pneg %p372
      // Predicated region
      $region61: #{tpu_custom_call.1} parent=5 // pred_check
        _
      $region62: #{tpu_custom_call.1} parent=5 // pred_check_branch
        %375 = sbr.rel (%p372) target = $region64
      $region63: #{tpu_custom_call.1} parent=5 // pred_region
        %s376 = ssub.s32 %s23, 1
        // Predicated region
        $region65: #{tpu_custom_call.1} parent=63 // pred_check
          %p377 = pneg %p70
        $region66: #{tpu_custom_call.1} parent=63 // pred_check_branch
          %379 = sbr.rel (%p377) target = $region68
        $region67: #{tpu_custom_call.1} parent=63 // pred_region
          %380 = dma.done [#allocation3], 256
        $region68: #{tpu_custom_call.1} parent=63 // pred_fallthru
          _
        // Predicated region
        $region69: #{tpu_custom_call.1} parent=63 // pred_check
          %p381 = pneg %p91
        $region70: #{tpu_custom_call.1} parent=63 // pred_check_branch
          %383 = sbr.rel (%p381) target = $region72
        $region71: #{tpu_custom_call.1} parent=63 // pred_region
          %384 = dma.done [#allocation7], 512
        $region72: #{tpu_custom_call.1} parent=63 // pred_fallthru
          _
        // Predicated region
        $region73: #{tpu_custom_call.1} parent=63 // pred_check
          %p385 = pneg %p259
        $region74: #{tpu_custom_call.1} parent=63 // pred_check_branch
          %387 = sbr.rel (%p385) target = $region76
        $region75: #{tpu_custom_call.1} parent=63 // pred_region
          %388 = dma.done [#allocation5], 16
        $region76: #{tpu_custom_call.1} parent=63 // pred_fallthru
          _
        %389 = sfence
        %p390 = scmp.lt.s32.totalorder %s28, 1
        %s391 = scalar_select %p390, %s28, 1
        %s392 = smul.addr %s391, 2
        %s393 = smul.addr %s392, 8
        %s394 = scalar_lea.vmem %s0, %s393
        %p395 = pneg %p49
        %p396 = pneg %p46
        %p397 = pneg %p70
        %p398 = pneg %p67
        %p399 = pneg %p91
        %p400 = pneg %p88
        %p401 = pneg %p112
        %p402 = pneg %p109
        %p403 = pneg %p133
        %p404 = pneg %p130
        %p405 = pneg %p154
        %p406 = pneg %p151
        %p407 = pneg %p175
        %p408 = pneg %p172
        %p409 = pneg %p196
        %p410 = pneg %p193
        %p411 = pneg %p217
        %p412 = pneg %p214
        %p413 = pneg %p238
        %p414 = pneg %p235
        %p415 = pneg %p259
        %p416 = pneg %p256
        %p417 = pneg %p285
        %p418 = pneg %p282
        %s419 = sand.u32 %s272, 1
        %s420 = scalar_lea.sflag [#allocation4], %s419
        %s421 = sand.u32 %s272, 1
        %s422 = smul.addr %s421, 16
        %s423 = scalar_lea.vmem [#allocation9], %s422
        %p424 = scmp.lt.s32.totalorder %s28, 1
        %s425 = scalar_select %p424, %s28, 1
        %s426 = smul.addr %s425, 2
        %s427 = smul.addr %s426, 8
        %s428 = scalar_lea.vmem %s0, %s427
        %v429 = vld [vmem:[%s428] sm:$0x3f]
        %v430 = vld [vmem:[%s428 + $0x8] sm:$0x3f]
        %v431 = vld [vmem:[%s428] sm:$0xc0]
        %v432 = vld [vmem:[%s428 + $0x8] sm:$0xc0]
        %v433 = vld [vmem:[%s3] sm:$0x3f]
        %435 = vset.pattern.permute.xlu0 0
        %436 = vperm.xlu0 %435, %v433
        %v437 = vpop.permute.xlu0 %436
        %v439 = vmul.f32 %v429, %v437
        %v440 = vmul.f32 %v430, %v437
        %v441 = vld [vmem:[%s4] sm:$0x3]
        %443 = vset.pattern.permute.xlu0 0
        %444 = vperm.xlu0 %443, %v441
        %v445 = vpop.permute.xlu0 %444
        %v446 = vrot.slane %v445, 2
        %v448 = vmul.f32 %v431, %v446
        %v449 = vmul.f32 %v432, %v446
        %v450 = vld [vmem:[%s5] sm:$0x3]
        %452 = vset.pattern.permute.xlu0 0
        %453 = vperm.xlu0 %452, %v450
        %v454 = vpop.permute.xlu0 %453
        %v455 = vrot.slane %v454, 2
        %v457 = vadd.f32 %v448, %v455
        %v458 = vadd.f32 %v449, %v455
        %v461 = vrot.slane %v431, 6
        %v462 = vrot.slane %v432, 6
        %465 = vrot.lane.b32.xlu0 %v461, 17
        %v466 = vpop.permute.xlu0 %465
        %467 = vrot.lane.b32.xlu0 %v462, 17
        %v468 = vpop.permute.xlu0 %467
        %v469 = vlaneseq
        %v470 = vand.u32 %v469, 127
        %vm471 = vcmp.lt.s32.totalorder %v470, 17
        %v472 = vsel %vm471, %v466, %v468
        %v473 = vsel %vm471, %v468, %v466
        %v474 = vld [vmem:[#allocation6] sm:$0xf]
        %v477 = vunpack.c.l.s4 1983009808
        %v478 = vunpack.c.0.s8 %v477
        %v479 = vlaneseq
        %v480 = vshrl.u32 %v479, 7
        %v481 = vsub.s32 %v478, %v480
        %v482 = vrot.slane %v474, %v481
        %v483 = vcombine.high %v482, %v482
        %v486 = vmul.f32 %v473, %v482
        %v487 = vmul.f32 %v472, %v483
        %v490 = vrot.slane %v486, 2
        %v491 = vrot.slane %v487, 2
        %v494 = vadd.f32 %v457, %v490
        %v495 = vadd.f32 %v458, %v491
        %496 = vrot.lane.b32.xlu0 %v461, 16
        %v497 = vpop.permute.xlu0 %496
        %498 = vrot.lane.b32.xlu0 %v462, 16
        %v499 = vpop.permute.xlu0 %498
        %vm500 = vcmp.lt.s32.totalorder %v470, 16
        %v501 = vsel %vm500, %v497, %v499
        %v502 = vsel %vm500, %v499, %v497
        %s503 = scalar_lea.vmem [#allocation6], 4
        %v504 = vld [vmem:[%s503] sm:$0xf]
        %v507 = vunpack.c.l.s4 1983009808
        %v508 = vunpack.c.0.s8 %v507
        %v509 = vlaneseq
        %v510 = vshrl.u32 %v509, 7
        %v511 = vsub.s32 %v508, %v510
        %v512 = vrot.slane %v504, %v511
        %v513 = vcombine.high %v512, %v512
        %v516 = vmul.f32 %v502, %v512
        %v517 = vmul.f32 %v501, %v513
        %v520 = vrot.slane %v516, 2
        %v521 = vrot.slane %v517, 2
        %v524 = vadd.f32 %v494, %v520
        %v525 = vadd.f32 %v495, %v521
        %526 = vrot.lane.b32.xlu0 %v461, 15
        %v527 = vpop.permute.xlu0 %526
        %528 = vrot.lane.b32.xlu0 %v462, 15
        %v529 = vpop.permute.xlu0 %528
        %vm530 = vcmp.lt.s32.totalorder %v470, 15
        %v531 = vsel %vm530, %v527, %v529
        %v532 = vsel %vm530, %v529, %v527
        %s533 = scalar_lea.vmem [#allocation6], 8
        %v534 = vld [vmem:[%s533] sm:$0xf]
        %v537 = vunpack.c.l.s4 1983009808
        %v538 = vunpack.c.0.s8 %v537
        %v539 = vlaneseq
        %v540 = vshrl.u32 %v539, 7
        %v541 = vsub.s32 %v538, %v540
        %v542 = vrot.slane %v534, %v541
        %v543 = vcombine.high %v542, %v542
        %v546 = vmul.f32 %v532, %v542
        %v547 = vmul.f32 %v531, %v543
        %v550 = vrot.slane %v546, 2
        %v551 = vrot.slane %v547, 2
        %v554 = vadd.f32 %v524, %v550
        %v555 = vadd.f32 %v525, %v551
        %556 = vrot.lane.b32.xlu0 %v461, 1
        %v557 = vpop.permute.xlu0 %556
        %558 = vrot.lane.b32.xlu0 %v462, 1
        %v559 = vpop.permute.xlu0 %558
        %vm560 = vcmp.lt.s32.totalorder %v470, 1
        %v561 = vsel %vm560, %v557, %v559
        %v562 = vsel %vm560, %v559, %v557
        %s563 = scalar_lea.vmem [#allocation6], 12
        %v564 = vld [vmem:[%s563] sm:$0xf]
        %v567 = vunpack.c.l.s4 1983009808
        %v568 = vunpack.c.0.s8 %v567
        %v569 = vlaneseq
        %v570 = vshrl.u32 %v569, 7
        %v571 = vsub.s32 %v568, %v570
        %v572 = vrot.slane %v564, %v571
        %v573 = vcombine.high %v572, %v572
        %v576 = vmul.f32 %v562, %v572
        %v577 = vmul.f32 %v561, %v573
        %v580 = vrot.slane %v576, 2
        %v581 = vrot.slane %v577, 2
        %v584 = vadd.f32 %v554, %v580
        %v585 = vadd.f32 %v555, %v581
        %586 = vrot.lane.b32.xlu0 %v461, 127
        %v587 = vpop.permute.xlu0 %586
        %588 = vrot.lane.b32.xlu0 %v462, 127
        %v589 = vpop.permute.xlu0 %588
        %vm590 = vcmp.lt.s32.totalorder %v470, 127
        %v591 = vsel %vm590, %v587, %v589
        %v592 = vsel %vm590, %v589, %v587
        %s593 = scalar_lea.vmem [#allocation6], 16
        %v594 = vld [vmem:[%s593] sm:$0xf]
        %v597 = vunpack.c.l.s4 1983009808
        %v598 = vunpack.c.0.s8 %v597
        %v599 = vlaneseq
        %v600 = vshrl.u32 %v599, 7
        %v601 = vsub.s32 %v598, %v600
        %v602 = vrot.slane %v594, %v601
        %v603 = vcombine.high %v602, %v602
        %v606 = vmul.f32 %v591, %v602
        %v607 = vmul.f32 %v592, %v603
        %v610 = vrot.slane %v606, 2
        %v611 = vrot.slane %v607, 2
        %v614 = vadd.f32 %v584, %v610
        %v615 = vadd.f32 %v585, %v611
        %616 = vrot.lane.b32.xlu0 %v461, 113
        %v617 = vpop.permute.xlu0 %616
        %618 = vrot.lane.b32.xlu0 %v462, 113
        %v619 = vpop.permute.xlu0 %618
        %vm620 = vcmp.lt.s32.totalorder %v470, 113
        %v621 = vsel %vm620, %v617, %v619
        %v622 = vsel %vm620, %v619, %v617
        %s623 = scalar_lea.vmem [#allocation6], 20
        %v624 = vld [vmem:[%s623] sm:$0xf]
        %v627 = vunpack.c.l.s4 1983009808
        %v628 = vunpack.c.0.s8 %v627
        %v629 = vlaneseq
        %v630 = vshrl.u32 %v629, 7
        %v631 = vsub.s32 %v628, %v630
        %v632 = vrot.slane %v624, %v631
        %v633 = vcombine.high %v632, %v632
        %v636 = vmul.f32 %v621, %v632
        %v637 = vmul.f32 %v622, %v633
        %v640 = vrot.slane %v636, 2
        %v641 = vrot.slane %v637, 2
        %v644 = vadd.f32 %v614, %v640
        %v645 = vadd.f32 %v615, %v641
        %646 = vrot.lane.b32.xlu0 %v461, 112
        %v647 = vpop.permute.xlu0 %646
        %648 = vrot.lane.b32.xlu0 %v462, 112
        %v649 = vpop.permute.xlu0 %648
        %vm650 = vcmp.lt.s32.totalorder %v470, 112
        %v651 = vsel %vm650, %v647, %v649
        %v652 = vsel %vm650, %v649, %v647
        %s653 = scalar_lea.vmem [#allocation6], 24
        %v654 = vld [vmem:[%s653] sm:$0xf]
        %v657 = vunpack.c.l.s4 1983009808
        %v658 = vunpack.c.0.s8 %v657
        %v659 = vlaneseq
        %v660 = vshrl.u32 %v659, 7
        %v661 = vsub.s32 %v658, %v660
        %v662 = vrot.slane %v654, %v661
        %v663 = vcombine.high %v662, %v662
        %v666 = vmul.f32 %v651, %v662
        %v667 = vmul.f32 %v652, %v663
        %v670 = vrot.slane %v666, 2
        %v671 = vrot.slane %v667, 2
        %v674 = vadd.f32 %v644, %v670
        %v675 = vadd.f32 %v645, %v671
        %676 = vrot.lane.b32.xlu0 %v461, 111
        %v677 = vpop.permute.xlu0 %676
        %678 = vrot.lane.b32.xlu0 %v462, 111
        %v679 = vpop.permute.xlu0 %678
        %vm680 = vcmp.lt.s32.totalorder %v470, 111
        %v681 = vsel %vm680, %v677, %v679
        %v682 = vsel %vm680, %v679, %v677
        %s683 = scalar_lea.vmem [#allocation6], 28
        %v684 = vld [vmem:[%s683] sm:$0xf]
        %v687 = vunpack.c.l.s4 1983009808
        %v688 = vunpack.c.0.s8 %v687
        %v689 = vlaneseq
        %v690 = vshrl.u32 %v689, 7
        %v691 = vsub.s32 %v688, %v690
        %v692 = vrot.slane %v684, %v691
        %v693 = vcombine.high %v692, %v692
        %v696 = vmul.f32 %v681, %v692
        %v697 = vmul.f32 %v682, %v693
        %v700 = vrot.slane %v696, 2
        %v701 = vrot.slane %v697, 2
        %v704 = vadd.f32 %v674, %v700
        %v705 = vadd.f32 %v675, %v701
        %vm706 = vcmask 1045504
        %v707 = vsel %vm706, %v439, -inf
        %v708 = vrot.slane %v707, 4
        %v709 = vmax.f32 %v707, %v708
        %v710 = vrot.slane %v709, 2
        %v711 = vmax.f32 %v709, %v710
        %v712 = vrot.slane %v711, 1
        %v713 = vmax.f32 %v711, %v712
        %v714 = vsel %vm706, %v440, -inf
        %v715 = vrot.slane %v714, 4
        %v716 = vmax.f32 %v714, %v715
        %v717 = vrot.slane %v716, 2
        %v718 = vmax.f32 %v716, %v717
        %v719 = vrot.slane %v718, 1
        %v720 = vmax.f32 %v718, %v719
        %vm721 = vcmask 1047558
        %v722 = vsel %vm721, %v704, -inf
        %v723 = vrot.slane %v722, 4
        %v724 = vmax.f32 %v722, %v723
        %v725 = vrot.slane %v724, 2
        %v726 = vmax.f32 %v724, %v725
        %v727 = vrot.slane %v726, 1
        %v728 = vmax.f32 %v726, %v727
        %v729 = vsel %vm721, %v705, -inf
        %v730 = vrot.slane %v729, 4
        %v731 = vmax.f32 %v729, %v730
        %v732 = vrot.slane %v731, 2
        %v733 = vmax.f32 %v731, %v732
        %v734 = vrot.slane %v733, 1
        %v735 = vmax.f32 %v733, %v734
        %v736 = vmax.f32 %v713, %v728
        %v737 = vmax.f32 %v720, %v735
        %v738 = vsel %vm706, %v439, 0.0
        %v739 = vrot.slane %v738, 4
        %v740 = vadd.f32 %v738, %v739
        %v741 = vrot.slane %v740, 2
        %v742 = vadd.f32 %v740, %v741
        %v743 = vrot.slane %v742, 1
        %v744 = vadd.f32 %v742, %v743
        %v745 = vsel %vm706, %v440, 0.0
        %v746 = vrot.slane %v745, 4
        %v747 = vadd.f32 %v745, %v746
        %v748 = vrot.slane %v747, 2
        %v749 = vadd.f32 %v747, %v748
        %v750 = vrot.slane %v749, 1
        %v751 = vadd.f32 %v749, %v750
        %v754 = vrot.slane %v704, 6
        %v755 = vrot.slane %v705, 6
        %vm758 = vcmask 1041408
        %v759 = vsel %vm758, %v754, 0.0
        %v760 = vrot.slane %v759, 4
        %v761 = vadd.f32 %v759, %v760
        %v762 = vrot.slane %v761, 2
        %v763 = vadd.f32 %v761, %v762
        %v764 = vrot.slane %v763, 1
        %v765 = vadd.f32 %v763, %v764
        %v766 = vsel %vm758, %v755, 0.0
        %v767 = vrot.slane %v766, 4
        %v768 = vadd.f32 %v766, %v767
        %v769 = vrot.slane %v768, 2
        %v770 = vadd.f32 %v768, %v769
        %v771 = vrot.slane %v770, 1
        %v772 = vadd.f32 %v770, %v771
        %v773 = vadd.f32 %v744, %v765
        %v774 = vadd.f32 %v751, %v772
        %v775 = vmul.f32 %v773, 0.125
        %v776 = vmul.f32 %v774, 0.125
        %s777 = sld [smem:[#allocation8 + $0x4]]
        %v778 = vstv %s777
        %v779 = vmul.f32 %v736, %v778
        %v780 = vmul.f32 %v737, %v778
        %s781 = sld [smem:[#allocation8 + $0xd]]
        %v782 = vstv %s781
        %v783 = vmul.f32 %v775, %v782
        %v784 = vmul.f32 %v776, %v782
        %v785 = vadd.f32 %v779, %v783
        %v786 = vadd.f32 %v780, %v784
        %s787 = sld [smem:[#allocation8 + $0x12]]
        %v788 = vstv %s787
        %v789 = vadd.f32 %v785, %v788
        %v790 = vadd.f32 %v786, %v788
        %s791 = sld [smem:[#allocation8]]
        %v792 = vstv %s791
        %v793 = vmul.f32 %v736, %v792
        %v794 = vmul.f32 %v737, %v792
        %s795 = sld [smem:[#allocation8 + $0x9]]
        %v796 = vstv %s795
        %v797 = vmul.f32 %v775, %v796
        %v798 = vmul.f32 %v776, %v796
        %v799 = vadd.f32 %v793, %v797
        %v800 = vadd.f32 %v794, %v798
        %801 = vrot.lane.b32.xlu0 %v799, 17
        %v802 = vpop.permute.xlu0 %801
        %803 = vrot.lane.b32.xlu0 %v800, 17
        %v804 = vpop.permute.xlu0 %803
        %v805 = vsel %vm471, %v802, %v804
        %v806 = vsel %vm471, %v804, %v802
        %v807 = vld [vmem:[#allocation2] sm:$0x3]
        %v809 = vlaneseq
        %v810 = vshrl.u32 %v809, 7
        %v811 = vsub.s32 0, %v810
        %v812 = vrot.slane %v807, %v811
        %v813 = vlaneseq
        %v814 = vshrl.u32 %v813, 7
        %v815 = vsub.s32 1, %v814
        %v816 = vrot.slane %v807, %v815
        %v819 = vmul.f32 %v806, %v812
        %v820 = vmul.f32 %v805, %v816
        %v821 = vadd.f32 %v789, %v819
        %v822 = vadd.f32 %v790, %v820
        %s823 = sld [smem:[#allocation8 + $0x1]]
        %v824 = vstv %s823
        %v825 = vmul.f32 %v736, %v824
        %v826 = vmul.f32 %v737, %v824
        %s827 = sld [smem:[#allocation8 + $0xa]]
        %v828 = vstv %s827
        %v829 = vmul.f32 %v775, %v828
        %v830 = vmul.f32 %v776, %v828
        %v831 = vadd.f32 %v825, %v829
        %v832 = vadd.f32 %v826, %v830
        %833 = vrot.lane.b32.xlu0 %v831, 16
        %v834 = vpop.permute.xlu0 %833
        %835 = vrot.lane.b32.xlu0 %v832, 16
        %v836 = vpop.permute.xlu0 %835
        %v837 = vsel %vm500, %v834, %v836
        %v838 = vsel %vm500, %v836, %v834
        %s839 = scalar_lea.vmem [#allocation2], 2
        %v840 = vld [vmem:[%s839] sm:$0x3]
        %v842 = vlaneseq
        %v843 = vshrl.u32 %v842, 7
        %v844 = vsub.s32 0, %v843
        %v845 = vrot.slane %v840, %v844
        %v846 = vlaneseq
        %v847 = vshrl.u32 %v846, 7
        %v848 = vsub.s32 1, %v847
        %v849 = vrot.slane %v840, %v848
        %v852 = vmul.f32 %v838, %v845
        %v853 = vmul.f32 %v837, %v849
        %v854 = vadd.f32 %v821, %v852
        %v855 = vadd.f32 %v822, %v853
        %s856 = sld [smem:[#allocation8 + $0x2]]
        %v857 = vstv %s856
        %v858 = vmul.f32 %v736, %v857
        %v859 = vmul.f32 %v737, %v857
        %s860 = sld [smem:[#allocation8 + $0xb]]
        %v861 = vstv %s860
        %v862 = vmul.f32 %v775, %v861
        %v863 = vmul.f32 %v776, %v861
        %v864 = vadd.f32 %v858, %v862
        %v865 = vadd.f32 %v859, %v863
        %866 = vrot.lane.b32.xlu0 %v864, 15
        %v867 = vpop.permute.xlu0 %866
        %868 = vrot.lane.b32.xlu0 %v865, 15
        %v869 = vpop.permute.xlu0 %868
        %v870 = vsel %vm530, %v867, %v869
        %v871 = vsel %vm530, %v869, %v867
        %s872 = scalar_lea.vmem [#allocation2], 4
        %v873 = vld [vmem:[%s872] sm:$0x3]
        %v875 = vlaneseq
        %v876 = vshrl.u32 %v875, 7
        %v877 = vsub.s32 0, %v876
        %v878 = vrot.slane %v873, %v877
        %v879 = vlaneseq
        %v880 = vshrl.u32 %v879, 7
        %v881 = vsub.s32 1, %v880
        %v882 = vrot.slane %v873, %v881
        %v885 = vmul.f32 %v871, %v878
        %v886 = vmul.f32 %v870, %v882
        %v887 = vadd.f32 %v854, %v885
        %v888 = vadd.f32 %v855, %v886
        %s889 = sld [smem:[#allocation8 + $0x3]]
        %v890 = vstv %s889
        %v891 = vmul.f32 %v736, %v890
        %v892 = vmul.f32 %v737, %v890
        %s893 = sld [smem:[#allocation8 + $0xc]]
        %v894 = vstv %s893
        %v895 = vmul.f32 %v775, %v894
        %v896 = vmul.f32 %v776, %v894
        %v897 = vadd.f32 %v891, %v895
        %v898 = vadd.f32 %v892, %v896
        %899 = vrot.lane.b32.xlu0 %v897, 1
        %v900 = vpop.permute.xlu0 %899
        %901 = vrot.lane.b32.xlu0 %v898, 1
        %v902 = vpop.permute.xlu0 %901
        %v903 = vsel %vm560, %v900, %v902
        %v904 = vsel %vm560, %v902, %v900
        %s905 = scalar_lea.vmem [#allocation2], 6
        %v906 = vld [vmem:[%s905] sm:$0x3]
        %v908 = vlaneseq
        %v909 = vshrl.u32 %v908, 7
        %v910 = vsub.s32 0, %v909
        %v911 = vrot.slane %v906, %v910
        %v912 = vlaneseq
        %v913 = vshrl.u32 %v912, 7
        %v914 = vsub.s32 1, %v913
        %v915 = vrot.slane %v906, %v914
        %v918 = vmul.f32 %v904, %v911
        %v919 = vmul.f32 %v903, %v915
        %v920 = vadd.f32 %v887, %v918
        %v921 = vadd.f32 %v888, %v919
        %s922 = sld [smem:[#allocation8 + $0x5]]
        %v923 = vstv %s922
        %v924 = vmul.f32 %v736, %v923
        %v925 = vmul.f32 %v737, %v923
        %s926 = sld [smem:[#allocation8 + $0xe]]
        %v927 = vstv %s926
        %v928 = vmul.f32 %v775, %v927
        %v929 = vmul.f32 %v776, %v927
        %v930 = vadd.f32 %v924, %v928
        %v931 = vadd.f32 %v925, %v929
        %932 = vrot.lane.b32.xlu0 %v930, 127
        %v933 = vpop.permute.xlu0 %932
        %934 = vrot.lane.b32.xlu0 %v931, 127
        %v935 = vpop.permute.xlu0 %934
        %v936 = vsel %vm590, %v933, %v935
        %v937 = vsel %vm590, %v935, %v933
        %s938 = scalar_lea.vmem [#allocation2], 8
        %v939 = vld [vmem:[%s938] sm:$0x3]
        %v941 = vlaneseq
        %v942 = vshrl.u32 %v941, 7
        %v943 = vsub.s32 0, %v942
        %v944 = vrot.slane %v939, %v943
        %v945 = vlaneseq
        %v946 = vshrl.u32 %v945, 7
        %v947 = vsub.s32 1, %v946
        %v948 = vrot.slane %v939, %v947
        %v951 = vmul.f32 %v936, %v944
        %v952 = vmul.f32 %v937, %v948
        %v953 = vadd.f32 %v920, %v951
        %v954 = vadd.f32 %v921, %v952
        %s955 = sld [smem:[#allocation8 + $0x6]]
        %v956 = vstv %s955
        %v957 = vmul.f32 %v736, %v956
        %v958 = vmul.f32 %v737, %v956
        %s959 = sld [smem:[#allocation8 + $0xf]]
        %v960 = vstv %s959
        %v961 = vmul.f32 %v775, %v960
        %v962 = vmul.f32 %v776, %v960
        %v963 = vadd.f32 %v957, %v961
        %v964 = vadd.f32 %v958, %v962
        %965 = vrot.lane.b32.xlu0 %v963, 113
        %v966 = vpop.permute.xlu0 %965
        %967 = vrot.lane.b32.xlu0 %v964, 113
        %v968 = vpop.permute.xlu0 %967
        %v969 = vsel %vm620, %v966, %v968
        %v970 = vsel %vm620, %v968, %v966
        %s971 = scalar_lea.vmem [#allocation2], 10
        %v972 = vld [vmem:[%s971] sm:$0x3]
        %v974 = vlaneseq
        %v975 = vshrl.u32 %v974, 7
        %v976 = vsub.s32 0, %v975
        %v977 = vrot.slane %v972, %v976
        %v978 = vlaneseq
        %v979 = vshrl.u32 %v978, 7
        %v980 = vsub.s32 1, %v979
        %v981 = vrot.slane %v972, %v980
        %v984 = vmul.f32 %v969, %v977
        %v985 = vmul.f32 %v970, %v981
        %v986 = vadd.f32 %v953, %v984
        %v987 = vadd.f32 %v954, %v985
        %s988 = sld [smem:[#allocation8 + $0x7]]
        %v989 = vstv %s988
        %v990 = vmul.f32 %v736, %v989
        %v991 = vmul.f32 %v737, %v989
        %s992 = sld [smem:[#allocation8 + $0x10]]
        %v993 = vstv %s992
        %v994 = vmul.f32 %v775, %v993
        %v995 = vmul.f32 %v776, %v993
        %v996 = vadd.f32 %v990, %v994
        %v997 = vadd.f32 %v991, %v995
        %998 = vrot.lane.b32.xlu0 %v996, 112
        %v999 = vpop.permute.xlu0 %998
        %1000 = vrot.lane.b32.xlu0 %v997, 112
        %v1001 = vpop.permute.xlu0 %1000
        %v1002 = vsel %vm650, %v999, %v1001
        %v1003 = vsel %vm650, %v1001, %v999
        %s1004 = scalar_lea.vmem [#allocation2], 12
        %v1005 = vld [vmem:[%s1004] sm:$0x3]
        %v1007 = vlaneseq
        %v1008 = vshrl.u32 %v1007, 7
        %v1009 = vsub.s32 0, %v1008
        %v1010 = vrot.slane %v1005, %v1009
        %v1011 = vlaneseq
        %v1012 = vshrl.u32 %v1011, 7
        %v1013 = vsub.s32 1, %v1012
        %v1014 = vrot.slane %v1005, %v1013
        %v1017 = vmul.f32 %v1002, %v1010
        %v1018 = vmul.f32 %v1003, %v1014
        %v1019 = vadd.f32 %v986, %v1017
        %v1020 = vadd.f32 %v987, %v1018
        %s1021 = sld [smem:[#allocation8 + $0x8]]
        %v1022 = vstv %s1021
        %v1023 = vmul.f32 %v736, %v1022
        %v1024 = vmul.f32 %v737, %v1022
        %s1025 = sld [smem:[#allocation8 + $0x11]]
        %v1026 = vstv %s1025
        %v1027 = vmul.f32 %v775, %v1026
        %v1028 = vmul.f32 %v776, %v1026
        %v1029 = vadd.f32 %v1023, %v1027
        %v1030 = vadd.f32 %v1024, %v1028
        %1031 = vrot.lane.b32.xlu0 %v1029, 111
        %v1032 = vpop.permute.xlu0 %1031
        %1033 = vrot.lane.b32.xlu0 %v1030, 111
        %v1034 = vpop.permute.xlu0 %1033
        %v1035 = vsel %vm680, %v1032, %v1034
        %v1036 = vsel %vm680, %v1034, %v1032
        %s1037 = scalar_lea.vmem [#allocation2], 14
        %v1038 = vld [vmem:[%s1037] sm:$0x3]
        %v1040 = vlaneseq
        %v1041 = vshrl.u32 %v1040, 7
        %v1042 = vsub.s32 0, %v1041
        %v1043 = vrot.slane %v1038, %v1042
        %v1044 = vlaneseq
        %v1045 = vshrl.u32 %v1044, 7
        %v1046 = vsub.s32 1, %v1045
        %v1047 = vrot.slane %v1038, %v1046
        %v1050 = vmul.f32 %v1035, %v1043
        %v1051 = vmul.f32 %v1036, %v1047
        %v1052 = vadd.f32 %v1019, %v1050
        %v1053 = vadd.f32 %v1020, %v1051
        %v1054 = vxor.u32 %v1052, 2147483648
        %v1055 = vxor.u32 %v1053, 2147483648
        %v1056 = vmul.f32 %v1054, 1.442695
        %v1057 = vpow.pop %v1056
        %v1058 = vmul.f32 %v1055, 1.442695
        %v1059 = vpow.pop %v1058
        %v1060 = vadd.f32 %v1057, 1.0
        %v1061 = vadd.f32 %v1059, 1.0
        %v1062 = vrcp.pop %v1060
        %v1063 = vmul.f32 1.0, %v1062
        %v1064 = vrcp.pop %v1061
        %v1065 = vmul.f32 1.0, %v1064
        %v1066 = vmul.f32 %v1052, %v1063
        %v1067 = vmul.f32 %v1053, %v1065
        %v1068 = vld [vmem:[%s6] sm:$0x3f]
        %1070 = vset.pattern.permute.xlu0 0
        %1071 = vperm.xlu0 %1070, %v1068
        %v1072 = vpop.permute.xlu0 %1071
        %v1074 = vlaneseq
        %v1075 = vshrl.u32 %v1074, 7
        %v1076 = vsub.s32 0, %v1075
        %v1077 = vrot.slane %v1066, %v1076
        %v1078 = vlaneseq
        %v1079 = vshrl.u32 %v1078, 7
        %v1080 = vsub.s32 0, %v1079
        %v1081 = vrot.slane %v1067, %v1080
        %v1082 = vmul.f32 %v1072, %v1077
        %v1083 = vmul.f32 %v1072, %v1081
        %v1084 = vld [vmem:[%s7] sm:$0x3f]
        %1086 = vset.pattern.permute.xlu0 0
        %1087 = vperm.xlu0 %1086, %v1084
        %v1088 = vpop.permute.xlu0 %1087
        %v1090 = vadd.f32 %v1082, %v1088
        %v1091 = vadd.f32 %v1083, %v1088
        %v1092 = vxor.u32 %v1090, 2147483648
        %v1093 = vxor.u32 %v1091, 2147483648
        %v1094 = vmul.f32 %v1092, 1.442695
        %v1095 = vpow.pop %v1094
        %v1096 = vmul.f32 %v1093, 1.442695
        %v1097 = vpow.pop %v1096
        %v1098 = vadd.f32 %v1095, 1.0
        %v1099 = vadd.f32 %v1097, 1.0
        %v1100 = vrcp.pop %v1098
        %v1101 = vmul.f32 1.0, %v1100
        %v1102 = vrcp.pop %v1099
        %v1103 = vmul.f32 1.0, %v1102
        %v1104 = vmul.f32 %v439, %v1101
        %v1105 = vmul.f32 %v440, %v1103
        %1106 = vst [vmem:[%s423] sm:$0x3f] %v1104
        %1107 = vst [vmem:[%s423 + $0x8] sm:$0x3f] %v1105
        %v1108 = vld [vmem:[%s8] sm:$0x3]
        %1110 = vset.pattern.permute.xlu0 0
        %1111 = vperm.xlu0 %1110, %v1108
        %v1112 = vpop.permute.xlu0 %1111
        %v1114 = vmul.f32 %v1112, %v1077
        %v1115 = vmul.f32 %v1112, %v1081
        %v1116 = vld [vmem:[%s9] sm:$0x3]
        %1118 = vset.pattern.permute.xlu0 0
        %1119 = vperm.xlu0 %1118, %v1116
        %v1120 = vpop.permute.xlu0 %1119
        %v1122 = vadd.f32 %v1114, %v1120
        %v1123 = vadd.f32 %v1115, %v1120
        %v1124 = vxor.u32 %v1122, 2147483648
        %v1125 = vxor.u32 %v1123, 2147483648
        %v1126 = vmul.f32 %v1124, 1.442695
        %v1127 = vpow.pop %v1126
        %v1128 = vmul.f32 %v1125, 1.442695
        %v1129 = vpow.pop %v1128
        %v1130 = vadd.f32 %v1127, 1.0
        %v1131 = vadd.f32 %v1129, 1.0
        %v1132 = vrcp.pop %v1130
        %v1133 = vmul.f32 1.0, %v1132
        %v1134 = vrcp.pop %v1131
        %v1135 = vmul.f32 1.0, %v1134
        %v1138 = vrot.slane %v1133, 2
        %v1139 = vrot.slane %v1135, 2
        %v1142 = vmul.f32 %v704, %v1138
        %v1143 = vmul.f32 %v705, %v1139
        %1144 = vst [vmem:[%s423] sm:$0xc0] %v1142
        %1145 = vst [vmem:[%s423 + $0x8] sm:$0xc0] %v1143
        %s1146 = sand.u32 %s272, 1
        %s1147 = scalar_lea.sflag [#allocation4], %s1146
        %s1148 = sand.u32 %s272, 1
        %s1149 = smul.addr %s1148, 16
        %s1150 = scalar_lea.vmem [#allocation9], %s1149
        // Predicated region
        $region77: #{tpu_custom_call.1} parent=63 // pred_check
          %p1151 = pneg %p282
        $region78: #{tpu_custom_call.1} parent=63 // pred_check_branch
          %1153 = sbr.rel (%p1151) target = $region80
        $region79: #{tpu_custom_call.1} parent=63 // pred_region
          %s1155 = ssub.s32 256, 256
          %1156 = vsyncadd %s1147, %s1155
          %s1157 = smul.addr %s28, 2
          %s1158 = smul.addr %s1157, 128
          %s1159 = scalar_lea.hbm %s11, %s1158
          %s1161 = sshll.u32 %s1150, 4
          %s1162 = int_to_ptr.vmem [resolvable:$true] %s1161
          %1164 = dma.vmem_to_hbm [thread:$0]  %s1162, 256, %s1159, %s1147
        $region80: #{tpu_custom_call.1} parent=63 // pred_fallthru
          _
      $region64: #{tpu_custom_call.1} parent=5 // pred_fallthru
        _
      %p1165 = scmp.le.s32.totalorder 2, %s23
      // Predicated region
      $region81: #{tpu_custom_call.1} parent=5 // pred_check
        %p1166 = pneg %p1165
      $region82: #{tpu_custom_call.1} parent=5 // pred_check_branch
        %1168 = sbr.rel (%p1166) target = $region84
      $region83: #{tpu_custom_call.1} parent=5 // pred_region
        %s1169 = ssub.s32 %s23, 2
        // Predicated region
        $region85: #{tpu_custom_call.1} parent=83 // pred_check
          %p1170 = pneg %p288
        $region86: #{tpu_custom_call.1} parent=83 // pred_check_branch
          %1172 = sbr.rel (%p1170) target = $region88
        $region87: #{tpu_custom_call.1} parent=83 // pred_region
          %s1173 = sand.u32 %s273, 1
          %s1174 = scalar_lea.sflag [#allocation4], %s1173
          %s1175 = sand.u32 %s273, 1
          %s1176 = smul.addr %s1175, 16
          %s1177 = scalar_lea.vmem [#allocation9], %s1176
          %1178 = dma.done %s1174, 256
        $region88: #{tpu_custom_call.1} parent=83 // pred_fallthru
          _
      $region84: #{tpu_custom_call.1} parent=5 // pred_fallthru
        _
    $region6: #{tpu_custom_call.1} parent=1 // loop_footer
      %s27 = sadd.s32 1, %s23
    $region7: #{tpu_custom_call.1} parent=1 // loop_footer_branch
      %22 = sbr.rel target = $region3
    $region8: #{tpu_custom_call.1} parent=1 // loop_exit
      _
    %1179 = vsyncpa [#allocation3], 1
    %s1180 = scalar_lea.sflag [#allocation3], 1
    %1181 = vsyncpa %s1180, 1
    %1182 = vsyncpa [#allocation7], 1
    %1183 = vsyncpa [#allocation4], 1
    %s1184 = scalar_lea.sflag [#allocation4], 1
    %1185 = vsyncpa %s1184, 1
    %1186 = vsyncpa [#allocation5], 1
    %s1187 = scalar_lea.sflag [#allocation5], 1
    %1188 = vsyncpa %s1187, 1

</llo_original>
